<compile_context>
chip_gen: v7x
topology: tpu7x:2x2x1
jax: 0.10.0
libtpu: 0.0.40
codegen_flags: <defaults>
</compile_context>

<pallas_src>
import functools

import numpy as np
import jax
import jax.numpy as jnp
from jax.experimental import pallas as pl
from jax.experimental.pallas import tpu as pltpu


# ----------------------------------------------------------------------------
# Pallas kernel: grid = (row blocks, k-th incoming edge).
# ----------------------------------------------------------------------------
def _decoder_kernel(
    hidden_ref, rel_ref, eattr_ref, ew_ref,
    w1r_ref, w1s_ref, b1_ref, w2_ref, b2_ref,            # msg_fc1 / msg_fc2 (stacked over used types)
    pw1_ref, pb1_ref, pw2_ref, pb2_ref,                  # present_msg_fc1 / present_msg_fc2
    win_ref, bin_ref, wp_ref, bp_ref, wh_ref,            # fused GRU projections ([., 3H])
    wo1_ref, bo1_ref, wo2_ref, bo2_ref, wo3_ref, bo3_ref,  # out_mlp
    out_ref,
    hr_ref, hsx_ref, aggh_ref, aggp_ref,                 # VMEM scratch
    *, n_nodes, n_types, n_hid, out_size):
  f32 = jnp.float32
  bf16 = jnp.bfloat16
  H, T, N = n_hid, n_types, n_nodes
  K = N - 1
  TH = T * H
  RB = hidden_ref.shape[0]

  def mm(a, w):
    # MXU matmul: bf16 operands, f32 accumulate.
    return jnp.dot(a.astype(bf16), w, preferred_element_type=f32)

  k = pl.program_id(1)

  # ---- once per row block: recv/send halves of msg_fc1, zero accumulators --
  @pl.when(k == 0)
  def _init():
    hidden = hidden_ref[...]                           # [RB, H] f32
    hr_ref[...] = mm(hidden, w1r_ref[...])             # recv half, [RB, T*H]
    hs = mm(hidden, w1s_ref[...])                      # send half, [RB, T*H]
    guard = jnp.zeros((N, TH), f32)                    # never selected, kept finite
    hsx_ref[...] = jnp.concatenate([guard, hs, guard], axis=0)
    aggh_ref[...] = jnp.zeros_like(aggh_ref)
    aggp_ref[...] = jnp.zeros_like(aggp_ref)

  # ---- k-th sender slab via structured in-block shift ----------------------
  # Rows are (batch, node) with whole graphs per block; the k-th in-edge of
  # node i is node (i+k+1) mod N, so the sender slab is hs shifted by k+1
  # within each N-row graph.  Two dynamic-start slices + a wrap select.
  slab_a = hsx_ref[pl.ds(N + k + 1, RB), :]            # hs[r + k + 1]      (no wrap)
  slab_b = hsx_ref[pl.ds(k + 1, RB), :]                # hs[r + k + 1 - N]  (wrapped)
  node = jax.lax.broadcasted_iota(jnp.int32, (RB, 1), 0) % N
  hs_k = jnp.where(node + (k + 1) >= N, slab_b, slab_a)

  ea_k = eattr_ref[...]                                # [RB, F_e] bf16 (geometric edge feats)
  ew_k = ew_ref[...]                                   # [RB, T]   f32  (edge-type weights)

  # hidden-state message MLP (tanh); dropout = identity (eval mode)
  m = jnp.tanh(hr_ref[...] + hs_k + b1_ref[...])       # [RB, T*H]
  m = jnp.tanh(mm(m, w2_ref[...]) + b2_ref[...])       # block-diag second layer

  # present (geometric) message MLP (relu)
  p = jnp.maximum(mm(ea_k, pw1_ref[...]) + pb1_ref[...], 0.0)
  p = jnp.maximum(mm(p, pw2_ref[...]) + pb2_ref[...], 0.0)

  def weighted_type_sum(x):                            # [RB, T*H] -> [RB, H]
    acc = x[:, 0:H] * ew_k[:, 0:1]
    for t in range(1, T):
      acc = acc + x[:, t * H:(t + 1) * H] * ew_k[:, t:t + 1]
    return acc

  aggh_ref[...] += weighted_type_sum(m)
  aggp_ref[...] += weighted_type_sum(p)

  # ---- last incoming edge: GRU + out_mlp + single lane-dense store ---------
  @pl.when(k == K - 1)
  def _finalize():
    inv_deg = 1.0 / float(K)                           # scatter(..., 'mean'); in-degree = N-1
    agg_h = aggh_ref[...] * inv_deg
    agg_p = aggp_ref[...] * inv_deg
    hidden = hidden_ref[...]
    rel = rel_ref[...]

    # fused GRU projections: [wir|wii|win], [wpr|wpi|wpn], [whr|whi|whh]
    gin = mm(rel, win_ref[...]) + bin_ref[...] + mm(agg_p, wp_ref[...]) + bp_ref[...]
    gh = mm(agg_h, wh_ref[...])
    r = jax.nn.sigmoid(gin[:, 0:H] + gh[:, 0:H])
    i_g = jax.nn.sigmoid(gin[:, H:2 * H] + gh[:, H:2 * H])
    n_g = jnp.tanh(gin[:, 2 * H:3 * H] + r * gh[:, 2 * H:3 * H])
    h_new = (1.0 - i_g) * n_g + i_g * hidden

    # out_mlp: Linear -> ReLU -> (Dropout=id) -> Linear -> ReLU -> (Dropout=id) -> Linear
    x = jnp.maximum(mm(h_new, wo1_ref[...]) + bo1_ref[...], 0.0)
    x = jnp.maximum(mm(x, wo2_ref[...]) + bo2_ref[...], 0.0)
    pred = mm(x, wo3_ref[...]) + bo3_ref[...]

    pad_w = out_ref.shape[-1] - (H + out_size)
    pieces = [h_new, pred]
    if pad_w:
      pieces.append(jnp.zeros((RB, pad_w), f32))
    out_ref[...] = jnp.concatenate(pieces, axis=-1)    # one full-width unmasked store


def _pick_row_block(BN, N, cap=512):
  """Row block: whole graphs per block, multiple of 8 (unless == BN), <= cap,
  preferring >= 2 grid steps on the parallel axis (v7x has two TensorCores)."""
  cands = []
  for graphs in range(1, BN // N + 1):
    rb = graphs * N
    if BN % rb:
      continue
    if rb != BN and rb % 8:
      continue
    cands.append(rb)
  multi = [rb for rb in cands if rb <= cap and BN // rb >= 2]
  if multi:
    return max(multi)
  small = [rb for rb in cands if rb <= cap]
  return max(small) if small else min(cands)


def build_pallas_forward(BN, RB, N, H, D_in, F_e, T, out_size, OW):
  K = N - 1
  TH = T * H
  kern = functools.partial(_decoder_kernel, n_nodes=N, n_types=T, n_hid=H,
                           out_size=out_size)

  def rows(c):                                   # row-block resident across k
    return pl.BlockSpec((RB, c), lambda i, k: (i, 0))

  def per_edge(c):                               # one per-k slab, pipelined
    return pl.BlockSpec((None, RB, c), lambda i, k: (k, i, 0))

  def shared(shape):                             # weights, resident
    return pl.BlockSpec(tuple(shape), lambda i, k: (0, 0))

  in_specs = [
      rows(H),                                   # hidden (receivers / GRU state)
      rows(D_in),                                # rel_feat
      per_edge(F_e),                             # edge_attr of k-th in-edge (bf16)
      per_edge(T),                               # edge-type weights, T lanes
      shared((H, TH)), shared((H, TH)), shared((1, TH)),   # w1r, w1s, b1
      shared((TH, TH)), shared((1, TH)),                   # w2 (block-diag), b2
      shared((F_e, TH)), shared((1, TH)),                  # pw1, pb1
      shared((TH, TH)), shared((1, TH)),                   # pw2 (block-diag), pb2
      shared((D_in, 3 * H)), shared((1, 3 * H)),           # win, b_in
      shared((H, 3 * H)), shared((1, 3 * H)),              # wp, bp
      shared((H, 3 * H)),                                  # wh (no bias)
      shared((H, H)), shared((1, H)),                      # wo1, bo1
      shared((H, H)), shared((1, H)),                      # wo2, bo2
      shared((H, out_size)), shared((1, out_size)),        # wo3, bo3
  ]
  out_specs = pl.BlockSpec((RB, OW), lambda i, k: (i, 0))
  out_shape = jax.ShapeDtypeStruct((BN, OW), jnp.float32)
  scratch_shapes = [
      pltpu.VMEM((RB, TH), jnp.float32),            # hr (recv half of msg_fc1)
      pltpu.VMEM((RB + 2 * N, TH), jnp.float32),    # hs, extended for wrap slices
      pltpu.VMEM((RB, H), jnp.float32),             # agg_h
      pltpu.VMEM((RB, H), jnp.float32),             # agg_p
  ]
  return pl.pallas_call(
      kern,
      grid=(BN // RB, K),
      in_specs=in_specs,
      out_specs=out_specs,
      out_shape=out_shape,
      scratch_shapes=scratch_shapes,
      compiler_params=pltpu.CompilerParams(
          dimension_semantics=("parallel", "arbitrary"),
          vmem_limit_bytes=48 * 1024 * 1024),
  )


# ----------------------------------------------------------------------------
# Localizer / Globalizer (plain-JAX glue).
# TODO(synk): Localizer/Globalizer source was not provided with the module;
# this is a LoCS-style 2D local-coordinate-frame construction with matching
# output shapes (rel_feat width = input_size, edge_attr width = 7 + input_size).
# ----------------------------------------------------------------------------
def localizer(inputs, send_edges, recv_edges, num_dims=2):
  pos = inputs[..., :num_dims]
  vel = inputs[..., num_dims:2 * num_dims]
  theta = jnp.arctan2(vel[..., 1], vel[..., 0])
  c, s = jnp.cos(theta), jnp.sin(theta)
  rot = jnp.stack([jnp.stack([c, s], -1), jnp.stack([-s, c], -1)], -2)
  rinv = jnp.swapaxes(rot, -1, -2)
  vel_local = jnp.einsum('bnij,bnj->bni', rot, vel)
  speed = jnp.linalg.norm(vel, axis=-1, keepdims=True)
  pos_norm = jnp.linalg.norm(pos, axis=-1, keepdims=True)
  rel_feat = jnp.concatenate([vel_local, speed, pos_norm], axis=-1)

  rot_r = rot[:, recv_edges]
  dpos = pos[:, send_edges] - pos[:, recv_edges]
  dvel = vel[:, send_edges] - vel[:, recv_edges]
  svel = vel[:, send_edges]
  dpos_l = jnp.einsum('beij,bej->bei', rot_r, dpos)
  dvel_l = jnp.einsum('beij,bej->bei', rot_r, dvel)
  svel_l = jnp.einsum('beij,bej->bei', rot_r, svel)
  dtheta = (theta[:, send_edges] - theta[:, recv_edges])[..., None]
  rel = jnp.concatenate([dpos_l, dvel_l, svel_l, dtheta], axis=-1)
  edge_attr = jnp.concatenate([rel, rel_feat[:, recv_edges]], axis=-1)
  edge_pos = jnp.concatenate([dpos_l, dtheta], axis=-1)
  return rel_feat, rinv, edge_attr, edge_pos


def globalizer(pred, rinv, num_dims=2):
  dp = jnp.einsum('bnij,bnj->bni', rinv, pred[..., :num_dims])
  dv = jnp.einsum('bnij,bnj->bni', rinv, pred[..., num_dims:2 * num_dims])
  return jnp.concatenate([dp, dv], axis=-1)


# ----------------------------------------------------------------------------
# Parameters (deterministic synthetic init: xavier-ish weights, bias = 0.1).
# Weights stored pre-transposed as [in_features, out_features].
# ----------------------------------------------------------------------------
def init_params(key, *, n_hid, input_size, edge_types, rel_in, out_size):
  H = n_hid
  ks = iter(jax.random.split(key, 24))

  def lin(fin, fout):
    std = float(np.sqrt(2.0 / (fin + fout)))
    w = jax.random.normal(next(ks), (fin, fout), jnp.float32) * std
    b = jnp.full((1, fout), 0.1, jnp.float32)
    return w, b

  def lin_stack(n, fin, fout):
    std = float(np.sqrt(2.0 / (fin + fout)))
    w = jax.random.normal(next(ks), (n, fin, fout), jnp.float32) * std
    b = jnp.full((n, fout), 0.1, jnp.float32)
    return w, b

  p = {}
  p['mw1'], p['mb1'] = lin_stack(edge_types, 2 * H, H)
  p['mw2'], p['mb2'] = lin_stack(edge_types, H, H)
  p['pw1'], p['pb1'] = lin_stack(edge_types, rel_in, H)
  p['pw2'], p['pb2'] = lin_stack(edge_types, H, H)
  std_h = float(np.sqrt(2.0 / (H + H)))
  for name in ('whr', 'whi', 'whh'):                 # bias=False in torch
    p[name] = jax.random.normal(next(ks), (H, H), jnp.float32) * std_h
  p['wir'], p['bir'] = lin(input_size, H)
  p['wii'], p['bii'] = lin(input_size, H)
  p['win'], p['bin'] = lin(input_size, H)
  p['wpr'], p['bpr'] = lin(H, H)
  p['wpi'], p['bpi'] = lin(H, H)
  p['wpn'], p['bpn'] = lin(H, H)
  p['wo1'], p['bo1'] = lin(H, H)
  p['wo2'], p['bo2'] = lin(H, H)
  p['wo3'], p['bo3'] = lin(H, out_size)
  return p


def pack_params(params, used_types, *, n_hid):
  """Pack per-type / per-gate weights into the fused layout the kernel expects."""
  H = n_hid
  bf = lambda x: jnp.asarray(x, jnp.bfloat16)
  f32 = lambda x: jnp.asarray(x, jnp.float32)

  def stack_out(ws):                       # list of [in, H] -> [in, T*H]
    return jnp.concatenate(ws, axis=1)

  def block_diag(ws):                      # list of [H, H] -> [T*H, T*H]
    T = len(ws)
    if T == 1:
      return ws[0]
    out = jnp.zeros((T * H, T * H), ws[0].dtype)
    for t, w in enumerate(ws):
      out = out.at[t * H:(t + 1) * H, t * H:(t + 1) * H].set(w)
    return out

  mw1 = [params['mw1'][t] for t in used_types]       # each [2H, H]
  w1r = stack_out([w[:H] for w in mw1])              # recv half
  w1s = stack_out([w[H:] for w in mw1])              # send half
  b1 = jnp.concatenate([params['mb1'][t][None, :] for t in used_types], axis=1)
  w2 = block_diag([params['mw2'][t] for t in used_types])
  b2 = jnp.concatenate([params['mb2'][t][None, :] for t in used_types], axis=1)
  pw1 = stack_out([params['pw1'][t] for t in used_types])
  pb1 = jnp.concatenate([params['pb1'][t][None, :] for t in used_types], axis=1)
  pw2 = block_diag([params['pw2'][t] for t in used_types])
  pb2 = jnp.concatenate([params['pb2'][t][None, :] for t in used_types], axis=1)

  win = jnp.concatenate([params['wir'], params['wii'], params['win']], axis=1)
  b_in = jnp.concatenate([params['bir'], params['bii'], params['bin']], axis=1)
  wp = jnp.concatenate([params['wpr'], params['wpi'], params['wpn']], axis=1)
  bp = jnp.concatenate([params['bpr'], params['bpi'], params['bpn']], axis=1)
  wh = jnp.concatenate([params['whr'], params['whi'], params['whh']], axis=1)

  return [bf(w1r), bf(w1s), f32(b1), bf(w2), f32(b2),
          bf(pw1), f32(pb1), bf(pw2), f32(pb2),
          bf(win), f32(b_in), bf(wp), f32(bp), bf(wh),
          bf(params['wo1']), f32(params['bo1']),
          bf(params['wo2']), f32(params['bo2']),
          bf(params['wo3']), f32(params['bo3'])]


# ----------------------------------------------------------------------------
# Forward pass (Pallas) and a pure-JAX reference for validation.
# ----------------------------------------------------------------------------
def recurrent_decoder_forward(inputs, hidden, edges, params, send_edges,
                              recv_edges, *, edge_types, skip_first,
                              row_block=None):
  B, N, D_in = inputs.shape
  H = hidden.shape[-1]
  out_size = D_in
  start = 1 if skip_first else 0
  used_types = list(range(start, edge_types))
  T = len(used_types)
  assert T >= 1, "need at least one active edge type"
  K = N - 1

  # Fully connected graph: map (receiver i, k-th in-edge) -> original edge
  # index with sender (i+k+1) mod N (the ordering the in-kernel shift assumes).
  send = np.asarray(send_edges)
  recv = np.asarray(recv_edges)
  E = send.shape[0]
  assert E == N * K, "kernel assumes the module's fully connected edge list"
  lut = np.full((N, N), -1, np.int64)
  lut[send, recv] = np.arange(E)
  perm = np.array([lut[(i + kk + 1) % N, i]
                   for i in range(N) for kk in range(K)], np.int64)
  assert (perm >= 0).all(), "kernel assumes every ordered node pair has one edge"

  rel_feat, rinv, edge_attr, _ = localizer(inputs, send_edges, recv_edges)
  F_e = edge_attr.shape[-1]

  # Per-(k-th in-edge) tensors, rows flattened batch-major: row = b*N + i.
  ea = edge_attr[:, perm, :].reshape(B, N, K, F_e)
  ea = jnp.transpose(ea, (2, 0, 1, 3)).reshape(K, B * N, F_e)
  ea = ea.astype(jnp.bfloat16)                               # matmul operand only

  ew = edges[:, :, start:][:, perm, :].reshape(B, N, K, T)   # drop skipped type
  ew = jnp.transpose(ew, (2, 0, 1, 3)).reshape(K, B * N, T)
  ew = ew.astype(jnp.float32)                                # [K, BN, T]: no H expansion

  hidden_flat = hidden.reshape(B * N, H).astype(jnp.float32)
  rel_flat = rel_feat.reshape(B * N, D_in).astype(jnp.float32)

  packed = pack_params(params, used_types, n_hid=H)

  BN = B * N
  RB = _pick_row_block(BN, N) if row_block is None else row_block
  assert BN % RB == 0 and RB % N == 0 and (RB == BN or RB % 8 == 0)

  OW = ((H + out_size + 127) // 128) * 128                   # lane-dense output slab

  call = build_pallas_forward(BN, RB, N, H, D_in, F_e, T, out_size, OW)
  out = call(hidden_flat, rel_flat, ea, ew, *packed)

  new_hidden = out[:, :H].reshape(B, N, H)
  pred = out[:, H:H + out_size].reshape(B, N, out_size)

  outputs = inputs + globalizer(pred, rinv)
  return outputs, new_hidden


def reference_forward(inputs, hidden, edges, params, send_edges, recv_edges,
                      *, edge_types, skip_first):
  B, N, _ = inputs.shape
  H = hidden.shape[-1]
  recv = jnp.asarray(recv_edges)
  pre_msg = jnp.concatenate([hidden[:, recv_edges, :],
                             hidden[:, send_edges, :]], axis=-1)
  start = 1 if skip_first else 0

  all_msgs = jnp.zeros(pre_msg.shape[:2] + (H,), jnp.float32)
  for i in range(start, edge_types):
    m = jnp.tanh(pre_msg @ params['mw1'][i] + params['mb1'][i])
    m = jnp.tanh(m @ params['mw2'][i] + params['mb2'][i])
    all_msgs = all_msgs + m * edges[:, :, i:i + 1]
  counts = jnp.zeros((N,), jnp.float32).at[recv].add(1.0)
  agg = jnp.zeros((B, N, H), jnp.float32).at[:, recv, :].add(all_msgs)
  agg = agg / counts[None, :, None]

  rel_feat, rinv, edge_attr, _ = localizer(inputs, send_edges, recv_edges)

  present = jnp.zeros(pre_msg.shape[:2] + (H,), jnp.float32)
  for i in range(start, edge_types):
    m = jax.nn.relu(edge_attr @ params['pw1'][i] + params['pb1'][i])
    m = jax.nn.relu(m @ params['pw2'][i] + params['pb2'][i])
    present = present + m * edges[:, :, i:i + 1]
  p_agg = jnp.zeros((B, N, H), jnp.float32).at[:, recv, :].add(present)
  p_agg = p_agg / counts[None, :, None]

  inp_r = rel_feat @ params['wir'] + params['bir'] + p_agg @ params['wpr'] + params['bpr']
  inp_i = rel_feat @ params['wii'] + params['bii'] + p_agg @ params['wpi'] + params['bpi']
  inp_n = rel_feat @ params['win'] + params['bin'] + p_agg @ params['wpn'] + params['bpn']

  r = jax.nn.sigmoid(inp_r + agg @ params['whr'])
  i_g = jax.nn.sigmoid(inp_i + agg @ params['whi'])
  n_g = jnp.tanh(inp_n + r * (agg @ params['whh']))
  hidden_new = (1.0 - i_g) * n_g + i_g * hidden

  x = jax.nn.relu(hidden_new @ params['wo1'] + params['bo1'])
  x = jax.nn.relu(x @ params['wo2'] + params['bo2'])
  pred = x @ params['wo3'] + params['bo3']

  return inputs + globalizer(pred, rinv), hidden_new


# ----------------------------------------------------------------------------
if __name__ == "__main__":
  B, N, H = 4, 8, 32
  edge_types = 2
  skip_first = True
  num_dims = 2
  input_size = 2 * num_dims                   # pos(2) + vel(2)
  out_size = input_size
  num_orient = num_dims * (num_dims - 1) // 2
  rel_in = (3 * num_dims + num_orient) + input_size   # present_msg_fc1 input = 11

  adj = np.ones((N, N)) - np.eye(N)
  send_edges = np.where(adj)[0]
  recv_edges = np.where(adj)[1]

  key = jax.random.PRNGKey(0)
  k_in, k_h, k_e, k_p = jax.random.split(key, 4)
  inputs = jax.random.normal(k_in, (B, N, input_size), jnp.float32)
  hidden = jax.random.normal(k_h, (B, N, H), jnp.float32) * 0.5
  edges = jax.nn.softmax(
      jax.random.normal(k_e, (B, N * (N - 1), edge_types), jnp.float32), axis=-1)

  params = init_params(k_p, n_hid=H, input_size=input_size,
                       edge_types=edge_types, rel_in=rel_in, out_size=out_size)

  outputs, new_hidden = recurrent_decoder_forward(
      inputs, hidden, edges, params, send_edges, recv_edges,
      edge_types=edge_types, skip_first=skip_first)
  jax.block_until_ready((outputs, new_hidden))

  ref_out, ref_hid = reference_forward(
      inputs, hidden, edges, params, send_edges, recv_edges,
      edge_types=edge_types, skip_first=skip_first)

  assert outputs.shape == (B, N, input_size) and new_hidden.shape == (B, N, H)
  assert np.allclose(np.asarray(outputs), np.asarray(ref_out),
                     atol=2e-2, rtol=2e-2)
  assert np.allclose(np.asarray(new_hidden), np.asarray(ref_hid),
                     atol=2e-2, rtol=2e-2)
  print("KERNEL_OK")
</pallas_src>

<mosaic_0001>
module attributes {stable_mosaic.version = 11 : i64} {
  func.func @_decoder_kernel(%arg0: i32, %arg1: i32, %arg2: memref<16x32xf32, #tpu.memory_space<vmem>>, %arg3: memref<16x4xf32, #tpu.memory_space<vmem>>, %arg4: memref<1x16x11xbf16, #tpu.memory_space<vmem>>, %arg5: memref<1x16x1xf32, #tpu.memory_space<vmem>>, %arg6: memref<32x32xbf16, #tpu.memory_space<vmem>>, %arg7: memref<32x32xbf16, #tpu.memory_space<vmem>>, %arg8: memref<1x32xf32, #tpu.memory_space<vmem>>, %arg9: memref<32x32xbf16, #tpu.memory_space<vmem>>, %arg10: memref<1x32xf32, #tpu.memory_space<vmem>>, %arg11: memref<11x32xbf16, #tpu.memory_space<vmem>>, %arg12: memref<1x32xf32, #tpu.memory_space<vmem>>, %arg13: memref<32x32xbf16, #tpu.memory_space<vmem>>, %arg14: memref<1x32xf32, #tpu.memory_space<vmem>>, %arg15: memref<4x96xbf16, #tpu.memory_space<vmem>>, %arg16: memref<1x96xf32, #tpu.memory_space<vmem>>, %arg17: memref<32x96xbf16, #tpu.memory_space<vmem>>, %arg18: memref<1x96xf32, #tpu.memory_space<vmem>>, %arg19: memref<32x96xbf16, #tpu.memory_space<vmem>>, %arg20: memref<32x32xbf16, #tpu.memory_space<vmem>>, %arg21: memref<1x32xf32, #tpu.memory_space<vmem>>, %arg22: memref<32x32xbf16, #tpu.memory_space<vmem>>, %arg23: memref<1x32xf32, #tpu.memory_space<vmem>>, %arg24: memref<32x4xbf16, #tpu.memory_space<vmem>>, %arg25: memref<1x4xf32, #tpu.memory_space<vmem>>, %arg26: memref<16x128xf32, #tpu.memory_space<vmem>>, %arg27: memref<16x32xf32, #tpu.memory_space<vmem>>, %arg28: memref<32x32xf32, #tpu.memory_space<vmem>>, %arg29: memref<16x32xf32, #tpu.memory_space<vmem>>, %arg30: memref<16x32xf32, #tpu.memory_space<vmem>>) attributes {dimension_semantics = [#tpu.dimension_semantics<parallel>, #tpu.dimension_semantics<arbitrary>], iteration_bounds = array<i64: 2, 7>, scalar_prefetch = 0 : i64, scratch_operands = 4 : i64, tpu.core_type = #tpu.core_type<tc>, window_params = [{transform_indices = @transform_0, window_bounds = array<i64: 16, 32>}, {transform_indices = @transform_1, window_bounds = array<i64: 16, 4>}, {transform_indices = @transform_2, window_bounds = array<i64: 1, 16, 11>}, {transform_indices = @transform_3, window_bounds = array<i64: 1, 16, 1>}, {pipeline_mode = #tpu.pipeline_mode<synchronous>, transform_indices = @transform_4, window_bounds = array<i64: 32, 32>}, {pipeline_mode = #tpu.pipeline_mode<synchronous>, transform_indices = @transform_5, window_bounds = array<i64: 32, 32>}, {pipeline_mode = #tpu.pipeline_mode<synchronous>, transform_indices = @transform_6, window_bounds = array<i64: 1, 32>}, {pipeline_mode = #tpu.pipeline_mode<synchronous>, transform_indices = @transform_7, window_bounds = array<i64: 32, 32>}, {pipeline_mode = #tpu.pipeline_mode<synchronous>, transform_indices = @transform_8, window_bounds = array<i64: 1, 32>}, {pipeline_mode = #tpu.pipeline_mode<synchronous>, transform_indices = @transform_9, window_bounds = array<i64: 11, 32>}, {pipeline_mode = #tpu.pipeline_mode<synchronous>, transform_indices = @transform_10, window_bounds = array<i64: 1, 32>}, {pipeline_mode = #tpu.pipeline_mode<synchronous>, transform_indices = @transform_11, window_bounds = array<i64: 32, 32>}, {pipeline_mode = #tpu.pipeline_mode<synchronous>, transform_indices = @transform_12, window_bounds = array<i64: 1, 32>}, {pipeline_mode = #tpu.pipeline_mode<synchronous>, transform_indices = @transform_13, window_bounds = array<i64: 4, 96>}, {pipeline_mode = #tpu.pipeline_mode<synchronous>, transform_indices = @transform_14, window_bounds = array<i64: 1, 96>}, {pipeline_mode = #tpu.pipeline_mode<synchronous>, transform_indices = @transform_15, window_bounds = array<i64: 32, 96>}, {pipeline_mode = #tpu.pipeline_mode<synchronous>, transform_indices = @transform_16, window_bounds = array<i64: 1, 96>}, {pipeline_mode = #tpu.pipeline_mode<synchronous>, transform_indices = @transform_17, window_bounds = array<i64: 32, 96>}, {pipeline_mode = #tpu.pipeline_mode<synchronous>, transform_indices = @transform_18, window_bounds = array<i64: 32, 32>}, {pipeline_mode = #tpu.pipeline_mode<synchronous>, transform_indices = @transform_19, window_bounds = array<i64: 1, 32>}, {pipeline_mode = #tpu.pipeline_mode<synchronous>, transform_indices = @transform_20, window_bounds = array<i64: 32, 32>}, {pipeline_mode = #tpu.pipeline_mode<synchronous>, transform_indices = @transform_21, window_bounds = array<i64: 1, 32>}, {pipeline_mode = #tpu.pipeline_mode<synchronous>, transform_indices = @transform_22, window_bounds = array<i64: 32, 4>}, {pipeline_mode = #tpu.pipeline_mode<synchronous>, transform_indices = @transform_23, window_bounds = array<i64: 1, 4>}, {transform_indices = @transform_24, window_bounds = array<i64: 16, 128>}]} {
    %c0_i32 = arith.constant 0 : i32
    %0 = arith.cmpi eq, %arg1, %c0_i32 : i32
    %1 = arith.extui %0 : i1 to i32
    %c0_i32_0 = arith.constant 0 : i32
    %2 = arith.cmpi ne, %1, %c0_i32_0 : i32
    scf.if %2 {
      %c0_46 = arith.constant 0 : index
      %c0_47 = arith.constant 0 : index
      %80 = vector.load %arg2[%c0_46, %c0_47] : memref<16x32xf32, #tpu.memory_space<vmem>>, vector<16x32xf32>
      %c0_48 = arith.constant 0 : index
      %c0_49 = arith.constant 0 : index
      %81 = vector.load %arg6[%c0_48, %c0_49] : memref<32x32xbf16, #tpu.memory_space<vmem>>, vector<32x32xbf16>
      %82 = arith.truncf %80 : vector<16x32xf32> to vector<16x32xbf16>
      %cst_50 = arith.constant dense<0.000000e+00> : vector<16x32xf32>
      %83 = tpu.matmul %82, %81, %cst_50 {dimension_numbers = #tpu.dot_dimension_numbers<[1], [0], [0], [1], [0, 0, 1, 1], [], []>} : vector<16x32xbf16>, vector<32x32xbf16>, vector<16x32xf32> -> vector<16x32xf32>
      %c0_51 = arith.constant 0 : index
      %c0_52 = arith.constant 0 : index
      %84 = vector.load %arg27[%c0_51, %c0_52] : memref<16x32xf32, #tpu.memory_space<vmem>>, vector<16x32xf32>
      tpu.vector_store %arg27[%c0_51, %c0_52], %83 {strides = array<i32>} : memref<16x32xf32, #tpu.memory_space<vmem>>, vector<16x32xf32>,
      %c0_53 = arith.constant 0 : index
      %c0_54 = arith.constant 0 : index
      %85 = vector.load %arg7[%c0_53, %c0_54] : memref<32x32xbf16, #tpu.memory_space<vmem>>, vector<32x32xbf16>
      %86 = arith.truncf %80 : vector<16x32xf32> to vector<16x32xbf16>
      %cst_55 = arith.constant dense<0.000000e+00> : vector<16x32xf32>
      %87 = tpu.matmul %86, %85, %cst_55 {dimension_numbers = #tpu.dot_dimension_numbers<[1], [0], [0], [1], [0, 0, 1, 1], [], []>} : vector<16x32xbf16>, vector<32x32xbf16>, vector<16x32xf32> -> vector<16x32xf32>
      %cst_56 = arith.constant 0.000000e+00 : f32
      %88 = vector.broadcast %cst_56 : f32 to vector<8x32xf32>
      %89 = tpu.concatenate %88, %87, %88 in 0 : vector<8x32xf32>, vector<16x32xf32>, vector<8x32xf32> -> vector<32x32xf32>
      %c0_57 = arith.constant 0 : index
      %c0_58 = arith.constant 0 : index
      %90 = vector.load %arg28[%c0_57, %c0_58] : memref<32x32xf32, #tpu.memory_space<vmem>>, vector<32x32xf32>
      tpu.vector_store %arg28[%c0_57, %c0_58], %89 {strides = array<i32>} : memref<32x32xf32, #tpu.memory_space<vmem>>, vector<32x32xf32>,
      %cst_59 = arith.constant 0.000000e+00 : f32
      %91 = vector.broadcast %cst_59 : f32 to vector<16x32xf32>
      %c0_60 = arith.constant 0 : index
      %c0_61 = arith.constant 0 : index
      %92 = vector.load %arg29[%c0_60, %c0_61] : memref<16x32xf32, #tpu.memory_space<vmem>>, vector<16x32xf32>
      tpu.vector_store %arg29[%c0_60, %c0_61], %91 {strides = array<i32>} : memref<16x32xf32, #tpu.memory_space<vmem>>, vector<16x32xf32>,
      %cst_62 = arith.constant 0.000000e+00 : f32
      %93 = vector.broadcast %cst_62 : f32 to vector<16x32xf32>
      %c0_63 = arith.constant 0 : index
      %c0_64 = arith.constant 0 : index
      %94 = vector.load %arg30[%c0_63, %c0_64] : memref<16x32xf32, #tpu.memory_space<vmem>>, vector<16x32xf32>
      tpu.vector_store %arg30[%c0_63, %c0_64], %93 {strides = array<i32>} : memref<16x32xf32, #tpu.memory_space<vmem>>, vector<16x32xf32>,
    } else {
    }
    %c8_i32 = arith.constant 8 : i32
    %3 = arith.addi %c8_i32, %arg1 : i32
    %c1_i32 = arith.constant 1 : i32
    %4 = arith.addi %3, %c1_i32 : i32
    %5 = arith.index_cast %4 : i32 to index
    %c0 = arith.constant 0 : index
    %6 = vector.load %arg28[%5, %c0] : memref<32x32xf32, #tpu.memory_space<vmem>>, vector<16x32xf32>
    %c1_i32_1 = arith.constant 1 : i32
    %7 = arith.addi %arg1, %c1_i32_1 : i32
    %8 = arith.index_cast %7 : i32 to index
    %c0_2 = arith.constant 0 : index
    %9 = vector.load %arg28[%8, %c0_2] : memref<32x32xf32, #tpu.memory_space<vmem>>, vector<16x32xf32>
    %10 = tpu.iota {dimensions = array<i32: 0>} : vector<16x1xi32>
    %c8_i32_3 = arith.constant 8 : i32
    %c0_i32_4 = arith.constant 0 : i32
    %11 = arith.cmpi eq, %c8_i32_3, %c0_i32_4 : i32
    %c1_i32_5 = arith.constant 1 : i32
    %12 = arith.select %11, %c1_i32_5, %c8_i32_3 : i32
    %13 = vector.broadcast %12 : i32 to vector<16x1xi32>
    %14 = arith.remsi %10, %13 : vector<16x1xi32>
    %c0_i32_6 = arith.constant 0 : i32
    %15 = vector.broadcast %c0_i32_6 : i32 to vector<16x1xi32>
    %16 = arith.cmpi ne, %14, %15 : vector<16x1xi32>
    %c0_i32_7 = arith.constant 0 : i32
    %17 = vector.broadcast %c0_i32_7 : i32 to vector<16x1xi32>
    %18 = arith.cmpi slt, %14, %17 : vector<16x1xi32>
    %c0_i32_8 = arith.constant 0 : i32
    %19 = arith.cmpi slt, %12, %c0_i32_8 : i32
    %20 = vector.broadcast %19 : i1 to vector<16x1xi1>
    %21 = vector.broadcast %20 : vector<16x1xi1> to vector<16x1xi1>
    %22 = arith.xori %18, %21 : vector<16x1xi1>
    %23 = arith.andi %22, %16 : vector<16x1xi1>
    %24 = vector.broadcast %12 : i32 to vector<16x1xi32>
    %25 = arith.addi %14, %24 : vector<16x1xi32>
    %26 = arith.select %23, %25, %14 : vector<16x1xi1>, vector<16x1xi32>
    %c1_i32_9 = arith.constant 1 : i32
    %27 = arith.addi %arg1, %c1_i32_9 : i32
    %28 = vector.broadcast %27 : i32 to vector<16x1xi32>
    %29 = arith.addi %26, %28 : vector<16x1xi32>
    %c8_i32_10 = arith.constant 8 : i32
    %30 = vector.broadcast %c8_i32_10 : i32 to vector<16x1xi32>
    %31 = arith.cmpi sge, %29, %30 : vector<16x1xi32>
    %32 = vector.shape_cast %31 : vector<16x1xi1> to vector<16x1xi1>
    %33 = vector.broadcast %32 : vector<16x1xi1> to vector<16x32xi1>
    %34 = arith.select %33, %9, %6 : vector<16x32xi1>, vector<16x32xf32>
    %c0_11 = arith.constant 0 : index
    %c0_12 = arith.constant 0 : index
    %c0_13 = arith.constant 0 : index
    %35 = vector.load %arg4[%c0_11, %c0_12, %c0_13] : memref<1x16x11xbf16, #tpu.memory_space<vmem>>, vector<1x16x11xbf16>
    %36 = vector.shape_cast %35 : vector<1x16x11xbf16> to vector<16x11xbf16>
    %c0_14 = arith.constant 0 : index
    %c0_15 = arith.constant 0 : index
    %c0_16 = arith.constant 0 : index
    %37 = vector.load %arg5[%c0_14, %c0_15, %c0_16] : memref<1x16x1xf32, #tpu.memory_space<vmem>>, vector<1x16x1xf32>
    %38 = vector.shape_cast %37 : vector<1x16x1xf32> to vector<16x1xf32>
    %c0_17 = arith.constant 0 : index
    %c0_18 = arith.constant 0 : index
    %39 = vector.load %arg27[%c0_17, %c0_18] : memref<16x32xf32, #tpu.memory_space<vmem>>, vector<16x32xf32>
    %40 = arith.addf %39, %34 : vector<16x32xf32>
    %c0_19 = arith.constant 0 : index
    %c0_20 = arith.constant 0 : index
    %41 = vector.load %arg8[%c0_19, %c0_20] : memref<1x32xf32, #tpu.memory_space<vmem>>, vector<1x32xf32>
    %42 = vector.broadcast %41 : vector<1x32xf32> to vector<16x32xf32>
    %43 = arith.addf %40, %42 : vector<16x32xf32>
    %44 = math.tanh %43 : vector<16x32xf32>
    %c0_21 = arith.constant 0 : index
    %c0_22 = arith.constant 0 : index
    %45 = vector.load %arg9[%c0_21, %c0_22] : memref<32x32xbf16, #tpu.memory_space<vmem>>, vector<32x32xbf16>
    %46 = arith.truncf %44 : vector<16x32xf32> to vector<16x32xbf16>
    %cst = arith.constant dense<0.000000e+00> : vector<16x32xf32>
    %47 = tpu.matmul %46, %45, %cst {dimension_numbers = #tpu.dot_dimension_numbers<[1], [0], [0], [1], [0, 0, 1, 1], [], []>} : vector<16x32xbf16>, vector<32x32xbf16>, vector<16x32xf32> -> vector<16x32xf32>
    %c0_23 = arith.constant 0 : index
    %c0_24 = arith.constant 0 : index
    %48 = vector.load %arg10[%c0_23, %c0_24] : memref<1x32xf32, #tpu.memory_space<vmem>>, vector<1x32xf32>
    %49 = vector.broadcast %48 : vector<1x32xf32> to vector<16x32xf32>
    %50 = arith.addf %47, %49 : vector<16x32xf32>
    %51 = math.tanh %50 : vector<16x32xf32>
    %c0_25 = arith.constant 0 : index
    %c0_26 = arith.constant 0 : index
    %52 = vector.load %arg11[%c0_25, %c0_26] : memref<11x32xbf16, #tpu.memory_space<vmem>>, vector<11x32xbf16>
    %cst_27 = arith.constant dense<0.000000e+00> : vector<16x32xf32>
    %53 = tpu.matmul %36, %52, %cst_27 {dimension_numbers = #tpu.dot_dimension_numbers<[1], [0], [0], [1], [0, 0, 1, 1], [], []>} : vector<16x11xbf16>, vector<11x32xbf16>, vector<16x32xf32> -> vector<16x32xf32>
    %c0_28 = arith.constant 0 : index
    %c0_29 = arith.constant 0 : index
    %54 = vector.load %arg12[%c0_28, %c0_29] : memref<1x32xf32, #tpu.memory_space<vmem>>, vector<1x32xf32>
    %55 = vector.broadcast %54 : vector<1x32xf32> to vector<16x32xf32>
    %56 = arith.addf %53, %55 : vector<16x32xf32>
    %cst_30 = arith.constant 0.000000e+00 : f32
    %57 = vector.broadcast %cst_30 : f32 to vector<16x32xf32>
    %58 = arith.maximumf %56, %57 : vector<16x32xf32>
    %c0_31 = arith.constant 0 : index
    %c0_32 = arith.constant 0 : index
    %59 = vector.load %arg13[%c0_31, %c0_32] : memref<32x32xbf16, #tpu.memory_space<vmem>>, vector<32x32xbf16>
    %60 = arith.truncf %58 : vector<16x32xf32> to vector<16x32xbf16>
    %cst_33 = arith.constant dense<0.000000e+00> : vector<16x32xf32>
    %61 = tpu.matmul %60, %59, %cst_33 {dimension_numbers = #tpu.dot_dimension_numbers<[1], [0], [0], [1], [0, 0, 1, 1], [], []>} : vector<16x32xbf16>, vector<32x32xbf16>, vector<16x32xf32> -> vector<16x32xf32>
    %c0_34 = arith.constant 0 : index
    %c0_35 = arith.constant 0 : index
    %62 = vector.load %arg14[%c0_34, %c0_35] : memref<1x32xf32, #tpu.memory_space<vmem>>, vector<1x32xf32>
    %63 = vector.broadcast %62 : vector<1x32xf32> to vector<16x32xf32>
    %64 = arith.addf %61, %63 : vector<16x32xf32>
    %cst_36 = arith.constant 0.000000e+00 : f32
    %65 = vector.broadcast %cst_36 : f32 to vector<16x32xf32>
    %66 = arith.maximumf %64, %65 : vector<16x32xf32>
    %c0_37 = arith.constant 0 : index
    %c0_38 = arith.constant 0 : index
    %67 = vector.load %arg29[%c0_37, %c0_38] : memref<16x32xf32, #tpu.memory_space<vmem>>, vector<16x32xf32>
    %68 = vector.broadcast %38 : vector<16x1xf32> to vector<16x32xf32>
    %69 = arith.mulf %51, %68 : vector<16x32xf32>
    %70 = arith.addf %67, %69 : vector<16x32xf32>
    %c0_39 = arith.constant 0 : index
    %c0_40 = arith.constant 0 : index
    %71 = vector.load %arg29[%c0_39, %c0_40] : memref<16x32xf32, #tpu.memory_space<vmem>>, vector<16x32xf32>
    tpu.vector_store %arg29[%c0_39, %c0_40], %70 {strides = array<i32>} : memref<16x32xf32, #tpu.memory_space<vmem>>, vector<16x32xf32>,
    %c0_41 = arith.constant 0 : index
    %c0_42 = arith.constant 0 : index
    %72 = vector.load %arg30[%c0_41, %c0_42] : memref<16x32xf32, #tpu.memory_space<vmem>>, vector<16x32xf32>
    %73 = vector.broadcast %38 : vector<16x1xf32> to vector<16x32xf32>
    %74 = arith.mulf %66, %73 : vector<16x32xf32>
    %75 = arith.addf %72, %74 : vector<16x32xf32>
    %c0_43 = arith.constant 0 : index
    %c0_44 = arith.constant 0 : index
    %76 = vector.load %arg30[%c0_43, %c0_44] : memref<16x32xf32, #tpu.memory_space<vmem>>, vector<16x32xf32>
    tpu.vector_store %arg30[%c0_43, %c0_44], %75 {strides = array<i32>} : memref<16x32xf32, #tpu.memory_space<vmem>>, vector<16x32xf32>,
    %c6_i32 = arith.constant 6 : i32
    %77 = arith.cmpi eq, %arg1, %c6_i32 : i32
    %78 = arith.extui %77 : i1 to i32
    %c0_i32_45 = arith.constant 0 : i32
    %79 = arith.cmpi ne, %78, %c0_i32_45 : i32
    scf.if %79 {
      %c0_46 = arith.constant 0 : index
      %c0_47 = arith.constant 0 : index
      %80 = vector.load %arg29[%c0_46, %c0_47] : memref<16x32xf32, #tpu.memory_space<vmem>>, vector<16x32xf32>
      %cst_48 = arith.constant 0.142857149 : f32
      %81 = vector.broadcast %cst_48 : f32 to vector<16x32xf32>
      %82 = arith.mulf %80, %81 : vector<16x32xf32>
      %c0_49 = arith.constant 0 : index
      %c0_50 = arith.constant 0 : index
      %83 = vector.load %arg30[%c0_49, %c0_50] : memref<16x32xf32, #tpu.memory_space<vmem>>, vector<16x32xf32>
      %cst_51 = arith.constant 0.142857149 : f32
      %84 = vector.broadcast %cst_51 : f32 to vector<16x32xf32>
      %85 = arith.mulf %83, %84 : vector<16x32xf32>
      %c0_52 = arith.constant 0 : index
      %c0_53 = arith.constant 0 : index
      %86 = vector.load %arg2[%c0_52, %c0_53] : memref<16x32xf32, #tpu.memory_space<vmem>>, vector<16x32xf32>
      %c0_54 = arith.constant 0 : index
      %c0_55 = arith.constant 0 : index
      %87 = vector.load %arg3[%c0_54, %c0_55] : memref<16x4xf32, #tpu.memory_space<vmem>>, vector<16x4xf32>
      %c0_56 = arith.constant 0 : index
      %c0_57 = arith.constant 0 : index
      %88 = vector.load %arg15[%c0_56, %c0_57] : memref<4x96xbf16, #tpu.memory_space<vmem>>, vector<4x96xbf16>
      %89 = arith.truncf %87 : vector<16x4xf32> to vector<16x4xbf16>
      %cst_58 = arith.constant dense<0.000000e+00> : vector<16x96xf32>
      %90 = tpu.matmul %89, %88, %cst_58 {dimension_numbers = #tpu.dot_dimension_numbers<[1], [0], [0], [1], [0, 0, 1, 1], [], []>} : vector<16x4xbf16>, vector<4x96xbf16>, vector<16x96xf32> -> vector<16x96xf32>
      %c0_59 = arith.constant 0 : index
      %c0_60 = arith.constant 0 : index
      %91 = vector.load %arg16[%c0_59, %c0_60] : memref<1x96xf32, #tpu.memory_space<vmem>>, vector<1x96xf32>
      %92 = vector.broadcast %91 : vector<1x96xf32> to vector<16x96xf32>
      %93 = arith.addf %90, %92 : vector<16x96xf32>
      %c0_61 = arith.constant 0 : index
      %c0_62 = arith.constant 0 : index
      %94 = vector.load %arg17[%c0_61, %c0_62] : memref<32x96xbf16, #tpu.memory_space<vmem>>, vector<32x96xbf16>
      %95 = arith.truncf %85 : vector<16x32xf32> to vector<16x32xbf16>
      %cst_63 = arith.constant dense<0.000000e+00> : vector<16x96xf32>
      %96 = tpu.matmul %95, %94, %cst_63 {dimension_numbers = #tpu.dot_dimension_numbers<[1], [0], [0], [1], [0, 0, 1, 1], [], []>} : vector<16x32xbf16>, vector<32x96xbf16>, vector<16x96xf32> -> vector<16x96xf32>
      %97 = arith.addf %93, %96 : vector<16x96xf32>
      %c0_64 = arith.constant 0 : index
      %c0_65 = arith.constant 0 : index
      %98 = vector.load %arg18[%c0_64, %c0_65] : memref<1x96xf32, #tpu.memory_space<vmem>>, vector<1x96xf32>
      %99 = vector.broadcast %98 : vector<1x96xf32> to vector<16x96xf32>
      %100 = arith.addf %97, %99 : vector<16x96xf32>
      %c0_66 = arith.constant 0 : index
      %c0_67 = arith.constant 0 : index
      %101 = vector.load %arg19[%c0_66, %c0_67] : memref<32x96xbf16, #tpu.memory_space<vmem>>, vector<32x96xbf16>
      %102 = arith.truncf %82 : vector<16x32xf32> to vector<16x32xbf16>
      %cst_68 = arith.constant dense<0.000000e+00> : vector<16x96xf32>
      %103 = tpu.matmul %102, %101, %cst_68 {dimension_numbers = #tpu.dot_dimension_numbers<[1], [0], [0], [1], [0, 0, 1, 1], [], []>} : vector<16x32xbf16>, vector<32x96xbf16>, vector<16x96xf32> -> vector<16x96xf32>
      %104 = vector.extract_strided_slice %100 {offsets = [0, 0], sizes = [16, 32], strides = [1, 1]} : vector<16x96xf32> to vector<16x32xf32>
      %105 = vector.extract_strided_slice %103 {offsets = [0, 0], sizes = [16, 32], strides = [1, 1]} : vector<16x96xf32> to vector<16x32xf32>
      %106 = arith.addf %104, %105 : vector<16x32xf32>
      %107 = arith.negf %106 : vector<16x32xf32>
      %108 = math.exp %107 : vector<16x32xf32>
      %cst_69 = arith.constant 1.000000e+00 : f32
      %109 = vector.broadcast %cst_69 : f32 to vector<16x32xf32>
      %110 = arith.addf %109, %108 : vector<16x32xf32>
      %111 = arith.divf %109, %110 : vector<16x32xf32>
      %112 = vector.extract_strided_slice %100 {offsets = [0, 32], sizes = [16, 32], strides = [1, 1]} : vector<16x96xf32> to vector<16x32xf32>
      %113 = vector.extract_strided_slice %103 {offsets = [0, 32], sizes = [16, 32], strides = [1, 1]} : vector<16x96xf32> to vector<16x32xf32>
      %114 = arith.addf %112, %113 : vector<16x32xf32>
      %115 = arith.negf %114 : vector<16x32xf32>
      %116 = math.exp %115 : vector<16x32xf32>
      %cst_70 = arith.constant 1.000000e+00 : f32
      %117 = vector.broadcast %cst_70 : f32 to vector<16x32xf32>
      %118 = arith.addf %117, %116 : vector<16x32xf32>
      %119 = arith.divf %117, %118 : vector<16x32xf32>
      %120 = vector.extract_strided_slice %100 {offsets = [0, 64], sizes = [16, 32], strides = [1, 1]} : vector<16x96xf32> to vector<16x32xf32>
      %121 = vector.extract_strided_slice %103 {offsets = [0, 64], sizes = [16, 32], strides = [1, 1]} : vector<16x96xf32> to vector<16x32xf32>
      %122 = arith.mulf %111, %121 : vector<16x32xf32>
      %123 = arith.addf %120, %122 : vector<16x32xf32>
      %124 = math.tanh %123 : vector<16x32xf32>
      %cst_71 = arith.constant 1.000000e+00 : f32
      %125 = vector.broadcast %cst_71 : f32 to vector<16x32xf32>
      %126 = arith.subf %125, %119 : vector<16x32xf32>
      %127 = arith.mulf %126, %124 : vector<16x32xf32>
      %128 = arith.mulf %119, %86 : vector<16x32xf32>
      %129 = arith.addf %127, %128 : vector<16x32xf32>
      %c0_72 = arith.constant 0 : index
      %c0_73 = arith.constant 0 : index
      %130 = vector.load %arg20[%c0_72, %c0_73] : memref<32x32xbf16, #tpu.memory_space<vmem>>, vector<32x32xbf16>
      %131 = arith.truncf %129 : vector<16x32xf32> to vector<16x32xbf16>
      %cst_74 = arith.constant dense<0.000000e+00> : vector<16x32xf32>
      %132 = tpu.matmul %131, %130, %cst_74 {dimension_numbers = #tpu.dot_dimension_numbers<[1], [0], [0], [1], [0, 0, 1, 1], [], []>} : vector<16x32xbf16>, vector<32x32xbf16>, vector<16x32xf32> -> vector<16x32xf32>
      %c0_75 = arith.constant 0 : index
      %c0_76 = arith.constant 0 : index
      %133 = vector.load %arg21[%c0_75, %c0_76] : memref<1x32xf32, #tpu.memory_space<vmem>>, vector<1x32xf32>
      %134 = vector.broadcast %133 : vector<1x32xf32> to vector<16x32xf32>
      %135 = arith.addf %132, %134 : vector<16x32xf32>
      %cst_77 = arith.constant 0.000000e+00 : f32
      %136 = vector.broadcast %cst_77 : f32 to vector<16x32xf32>
      %137 = arith.maximumf %135, %136 : vector<16x32xf32>
      %c0_78 = arith.constant 0 : index
      %c0_79 = arith.constant 0 : index
      %138 = vector.load %arg22[%c0_78, %c0_79] : memref<32x32xbf16, #tpu.memory_space<vmem>>, vector<32x32xbf16>
      %139 = arith.truncf %137 : vector<16x32xf32> to vector<16x32xbf16>
      %cst_80 = arith.constant dense<0.000000e+00> : vector<16x32xf32>
      %140 = tpu.matmul %139, %138, %cst_80 {dimension_numbers = #tpu.dot_dimension_numbers<[1], [0], [0], [1], [0, 0, 1, 1], [], []>} : vector<16x32xbf16>, vector<32x32xbf16>, vector<16x32xf32> -> vector<16x32xf32>
      %c0_81 = arith.constant 0 : index
      %c0_82 = arith.constant 0 : index
      %141 = vector.load %arg23[%c0_81, %c0_82] : memref<1x32xf32, #tpu.memory_space<vmem>>, vector<1x32xf32>
      %142 = vector.broadcast %141 : vector<1x32xf32> to vector<16x32xf32>
      %143 = arith.addf %140, %142 : vector<16x32xf32>
      %cst_83 = arith.constant 0.000000e+00 : f32
      %144 = vector.broadcast %cst_83 : f32 to vector<16x32xf32>
      %145 = arith.maximumf %143, %144 : vector<16x32xf32>
      %c0_84 = arith.constant 0 : index
      %c0_85 = arith.constant 0 : index
      %146 = vector.load %arg24[%c0_84, %c0_85] : memref<32x4xbf16, #tpu.memory_space<vmem>>, vector<32x4xbf16>
      %147 = arith.truncf %145 : vector<16x32xf32> to vector<16x32xbf16>
      %cst_86 = arith.constant dense<0.000000e+00> : vector<16x4xf32>
      %148 = tpu.matmul %147, %146, %cst_86 {dimension_numbers = #tpu.dot_dimension_numbers<[1], [0], [0], [1], [0, 0, 1, 1], [], []>} : vector<16x32xbf16>, vector<32x4xbf16>, vector<16x4xf32> -> vector<16x4xf32>
      %c0_87 = arith.constant 0 : index
      %c0_88 = arith.constant 0 : index
      %149 = vector.load %arg25[%c0_87, %c0_88] : memref<1x4xf32, #tpu.memory_space<vmem>>, vector<1x4xf32>
      %150 = vector.broadcast %149 : vector<1x4xf32> to vector<16x4xf32>
      %151 = arith.addf %148, %150 : vector<16x4xf32>
      %cst_89 = arith.constant 0.000000e+00 : f32
      %152 = vector.broadcast %cst_89 : f32 to vector<16x92xf32>
      %153 = tpu.concatenate %129, %151, %152 in 1 : vector<16x32xf32>, vector<16x4xf32>, vector<16x92xf32> -> vector<16x128xf32>
      %c0_90 = arith.constant 0 : index
      %c0_91 = arith.constant 0 : index
      %154 = vector.load %arg26[%c0_90, %c0_91] : memref<16x128xf32, #tpu.memory_space<vmem>>, vector<16x128xf32>
      tpu.vector_store %arg26[%c0_90, %c0_91], %153 {strides = array<i32>} : memref<16x128xf32, #tpu.memory_space<vmem>>, vector<16x128xf32>,
    } else {
    }
    return
  }
  func.func @transform_0(%arg0: i32, %arg1: i32) -> (i32, i32) {
    %c0_i32 = arith.constant 0 : i32
    %c0_i32_0 = arith.constant 0 : i32
    return %arg0, %c0_i32 : i32, i32
  }
  func.func @transform_1(%arg0: i32, %arg1: i32) -> (i32, i32) {
    %c0_i32 = arith.constant 0 : i32
    %c0_i32_0 = arith.constant 0 : i32
    return %arg0, %c0_i32 : i32, i32
  }
  func.func @transform_2(%arg0: i32, %arg1: i32) -> (i32, i32, i32) {
    %c0_i32 = arith.constant 0 : i32
    %c0_i32_0 = arith.constant 0 : i32
    return %arg1, %arg0, %c0_i32 : i32, i32, i32
  }
  func.func @transform_3(%arg0: i32, %arg1: i32) -> (i32, i32, i32) {
    %c0_i32 = arith.constant 0 : i32
    %c0_i32_0 = arith.constant 0 : i32
    return %arg1, %arg0, %c0_i32 : i32, i32, i32
  }
  func.func @transform_4(%arg0: i32, %arg1: i32) -> (i32, i32) {
    %c0_i32 = arith.constant 0 : i32
    %c0_i32_0 = arith.constant 0 : i32
    %c0_i32_1 = arith.constant 0 : i32
    return %c0_i32, %c0_i32_0 : i32, i32
  }
  func.func @transform_5(%arg0: i32, %arg1: i32) -> (i32, i32) {
    %c0_i32 = arith.constant 0 : i32
    %c0_i32_0 = arith.constant 0 : i32
    %c0_i32_1 = arith.constant 0 : i32
    return %c0_i32, %c0_i32_0 : i32, i32
  }
  func.func @transform_6(%arg0: i32, %arg1: i32) -> (i32, i32) {
    %c0_i32 = arith.constant 0 : i32
    %c0_i32_0 = arith.constant 0 : i32
    %c0_i32_1 = arith.constant 0 : i32
    return %c0_i32, %c0_i32_0 : i32, i32
  }
  func.func @transform_7(%arg0: i32, %arg1: i32) -> (i32, i32) {
    %c0_i32 = arith.constant 0 : i32
    %c0_i32_0 = arith.constant 0 : i32
    %c0_i32_1 = arith.constant 0 : i32
    return %c0_i32, %c0_i32_0 : i32, i32
  }
  func.func @transform_8(%arg0: i32, %arg1: i32) -> (i32, i32) {
    %c0_i32 = arith.constant 0 : i32
    %c0_i32_0 = arith.constant 0 : i32
    %c0_i32_1 = arith.constant 0 : i32
    return %c0_i32, %c0_i32_0 : i32, i32
  }
  func.func @transform_9(%arg0: i32, %arg1: i32) -> (i32, i32) {
    %c0_i32 = arith.constant 0 : i32
    %c0_i32_0 = arith.constant 0 : i32
    %c0_i32_1 = arith.constant 0 : i32
    return %c0_i32, %c0_i32_0 : i32, i32
  }
  func.func @transform_10(%arg0: i32, %arg1: i32) -> (i32, i32) {
    %c0_i32 = arith.constant 0 : i32
    %c0_i32_0 = arith.constant 0 : i32
    %c0_i32_1 = arith.constant 0 : i32
    return %c0_i32, %c0_i32_0 : i32, i32
  }
  func.func @transform_11(%arg0: i32, %arg1: i32) -> (i32, i32) {
    %c0_i32 = arith.constant 0 : i32
    %c0_i32_0 = arith.constant 0 : i32
    %c0_i32_1 = arith.constant 0 : i32
    return %c0_i32, %c0_i32_0 : i32, i32
  }
  func.func @transform_12(%arg0: i32, %arg1: i32) -> (i32, i32) {
    %c0_i32 = arith.constant 0 : i32
    %c0_i32_0 = arith.constant 0 : i32
    %c0_i32_1 = arith.constant 0 : i32
    return %c0_i32, %c0_i32_0 : i32, i32
  }
  func.func @transform_13(%arg0: i32, %arg1: i32) -> (i32, i32) {
    %c0_i32 = arith.constant 0 : i32
    %c0_i32_0 = arith.constant 0 : i32
    %c0_i32_1 = arith.constant 0 : i32
    return %c0_i32, %c0_i32_0 : i32, i32
  }
  func.func @transform_14(%arg0: i32, %arg1: i32) -> (i32, i32) {
    %c0_i32 = arith.constant 0 : i32
    %c0_i32_0 = arith.constant 0 : i32
    %c0_i32_1 = arith.constant 0 : i32
    return %c0_i32, %c0_i32_0 : i32, i32
  }
  func.func @transform_15(%arg0: i32, %arg1: i32) -> (i32, i32) {
    %c0_i32 = arith.constant 0 : i32
    %c0_i32_0 = arith.constant 0 : i32
    %c0_i32_1 = arith.constant 0 : i32
    return %c0_i32, %c0_i32_0 : i32, i32
  }
  func.func @transform_16(%arg0: i32, %arg1: i32) -> (i32, i32) {
    %c0_i32 = arith.constant 0 : i32
    %c0_i32_0 = arith.constant 0 : i32
    %c0_i32_1 = arith.constant 0 : i32
    return %c0_i32, %c0_i32_0 : i32, i32
  }
  func.func @transform_17(%arg0: i32, %arg1: i32) -> (i32, i32) {
    %c0_i32 = arith.constant 0 : i32
    %c0_i32_0 = arith.constant 0 : i32
    %c0_i32_1 = arith.constant 0 : i32
    return %c0_i32, %c0_i32_0 : i32, i32
  }
  func.func @transform_18(%arg0: i32, %arg1: i32) -> (i32, i32) {
    %c0_i32 = arith.constant 0 : i32
    %c0_i32_0 = arith.constant 0 : i32
    %c0_i32_1 = arith.constant 0 : i32
    return %c0_i32, %c0_i32_0 : i32, i32
  }
  func.func @transform_19(%arg0: i32, %arg1: i32) -> (i32, i32) {
    %c0_i32 = arith.constant 0 : i32
    %c0_i32_0 = arith.constant 0 : i32
    %c0_i32_1 = arith.constant 0 : i32
    return %c0_i32, %c0_i32_0 : i32, i32
  }
  func.func @transform_20(%arg0: i32, %arg1: i32) -> (i32, i32) {
    %c0_i32 = arith.constant 0 : i32
    %c0_i32_0 = arith.constant 0 : i32
    %c0_i32_1 = arith.constant 0 : i32
    return %c0_i32, %c0_i32_0 : i32, i32
  }
  func.func @transform_21(%arg0: i32, %arg1: i32) -> (i32, i32) {
    %c0_i32 = arith.constant 0 : i32
    %c0_i32_0 = arith.constant 0 : i32
    %c0_i32_1 = arith.constant 0 : i32
    return %c0_i32, %c0_i32_0 : i32, i32
  }
  func.func @transform_22(%arg0: i32, %arg1: i32) -> (i32, i32) {
    %c0_i32 = arith.constant 0 : i32
    %c0_i32_0 = arith.constant 0 : i32
    %c0_i32_1 = arith.constant 0 : i32
    return %c0_i32, %c0_i32_0 : i32, i32
  }
  func.func @transform_23(%arg0: i32, %arg1: i32) -> (i32, i32) {
    %c0_i32 = arith.constant 0 : i32
    %c0_i32_0 = arith.constant 0 : i32
    %c0_i32_1 = arith.constant 0 : i32
    return %c0_i32, %c0_i32_0 : i32, i32
  }
  func.func @transform_24(%arg0: i32, %arg1: i32) -> (i32, i32) {
    %c0_i32 = arith.constant 0 : i32
    %c0_i32_0 = arith.constant 0 : i32
    return %arg0, %c0_i32 : i32, i32
  }
}

</mosaic_0001>

<llo_original>
// kernel: tpu_custom_call.1
$region0: #{tpu_custom_call.1}
  #allocation0 [shape = 'u32[]', space=smem, size = 0x4, offset = 0x4, fixed_abs, tag = 'smem constant byte address 0x4 - core index']
  #allocation1 [shape = 'u32[144,128]{1,0:T(1,128)}', space=vmem, size = 0x12000, scoped, tag = 'internal scratch']
  #allocation2 [shape = 'f32[16,32]{1,0:T(8,128)}', space=vmem, size = 0x2000, scoped, tag = 'scratch operand']
  #allocation3 [shape = 'f32[32,32]{1,0:T(8,128)}', space=vmem, size = 0x4000, scoped, tag = 'scratch operand']
  #allocation4 [shape = 'f32[16,32]{1,0:T(8,128)}', space=vmem, size = 0x2000, scoped, tag = 'scratch operand']
  #allocation5 [shape = 'f32[16,32]{1,0:T(8,128)}', space=vmem, size = 0x2000, scoped, tag = 'scratch operand']
  %s0 = inlined_call_operand.vmem [shape: f32[32,32], index: 0, kind: input, shape index: {}]
  %s1 = inlined_call_operand.vmem [shape: f32[32,4], index: 1, kind: input, shape index: {}]
  %s2 = inlined_call_operand.vmem [shape: bf16[7,32,11], index: 2, kind: input, shape index: {}]
  %s3 = inlined_call_operand.vmem [shape: f32[7,32,1], index: 3, kind: input, shape index: {}]
  %s4 = inlined_call_operand.vmem [shape: bf16[32,32], index: 4, kind: input, shape index: {}]
  %s5 = inlined_call_operand.vmem [shape: bf16[32,32], index: 5, kind: input, shape index: {}]
  %s6 = inlined_call_operand.vmem [shape: f32[1,32], index: 6, kind: input, shape index: {}]
  %s7 = inlined_call_operand.vmem [shape: bf16[32,32], index: 7, kind: input, shape index: {}]
  %s8 = inlined_call_operand.vmem [shape: f32[1,32], index: 8, kind: input, shape index: {}]
  %s9 = inlined_call_operand.vmem [shape: bf16[11,32], index: 9, kind: input, shape index: {}]
  %s10 = inlined_call_operand.vmem [shape: f32[1,32], index: 10, kind: input, shape index: {}]
  %s11 = inlined_call_operand.vmem [shape: bf16[32,32], index: 11, kind: input, shape index: {}]
  %s12 = inlined_call_operand.vmem [shape: f32[1,32], index: 12, kind: input, shape index: {}]
  %s13 = inlined_call_operand.vmem [shape: bf16[4,96], index: 13, kind: input, shape index: {}]
  %s14 = inlined_call_operand.vmem [shape: f32[1,96], index: 14, kind: input, shape index: {}]
  %s15 = inlined_call_operand.vmem [shape: bf16[32,96], index: 15, kind: input, shape index: {}]
  %s16 = inlined_call_operand.vmem [shape: f32[1,96], index: 16, kind: input, shape index: {}]
  %s17 = inlined_call_operand.vmem [shape: bf16[32,96], index: 17, kind: input, shape index: {}]
  %s18 = inlined_call_operand.vmem [shape: bf16[32,32], index: 18, kind: input, shape index: {}]
  %s19 = inlined_call_operand.vmem [shape: f32[1,32], index: 19, kind: input, shape index: {}]
  %s20 = inlined_call_operand.vmem [shape: bf16[32,32], index: 20, kind: input, shape index: {}]
  %s21 = inlined_call_operand.vmem [shape: f32[1,32], index: 21, kind: input, shape index: {}]
  %s22 = inlined_call_operand.vmem [shape: bf16[32,4], index: 22, kind: input, shape index: {}]
  %s23 = inlined_call_operand.vmem [shape: f32[1,4], index: 23, kind: input, shape index: {}]
  %s24 = inlined_call_operand.hbm [shape: f32[32,128], index: 24, kind: output, shape index: {}]
  %s25 = sld [smem:[#allocation0]]
  $region137: #{tpu_custom_call.1} parent=0
    _
  %s27 = ssub.s32 1, %s25
  %s28 = scalar_select 0, %s27, %s25
  $region1: #{tpu_custom_call.1} parent=0
    #allocation6 [shape = 'u8[16384]{0}', space=vmem, size = 0x4000, scoped, tag = 'output window, operand 0']
    #allocation7 [shape = 's32[2]{0}', space=sflag, size = 0x8, scoped, tag = 'scoped memory for tpu_custom_call.1']
    %29 = vsyncpa [#allocation7], 0
    %s30 = scalar_lea.sflag [#allocation7], 1
    %31 = vsyncpa %s30, 0
    loop: start=0, step=1, limit=16
    $region2: #{tpu_custom_call.1} parent=1 // loop_pre_header
      _
    $region3: #{tpu_custom_call.1} parent=1 // loop_header
      %s33 = sphi 0, %s37
      %p34 = scmp.ge.s32.totalorder %s33, 16
      %s40 = sphi 0, %s52
      %s41 = sphi 0, %s48
      %s42 = sphi 0, %s40
      %s43 = sphi 0, %s41
      %s44 = sphi 0, %s42
      %s45 = sphi 0, %s43
      %s55 = sphi 0, %s57
      %s58 = sphi 0, %s55
      %s59 = sphi 0, %s58
      %s75 = sphi 0, %s59
      %s81 = sphi 0, %s83
      %s84 = sphi 0, %s81
      %s85 = sphi 0, %s84
      %s101 = sphi 0, %s85
      %s109 = sphi 0, %s111
      %s112 = sphi 0, %s109
      %s113 = sphi 0, %s112
      %s129 = sphi 0, %s113
      %s137 = sphi 0, %s139
      %s140 = sphi 0, %s137
      %s141 = sphi 0, %s140
      %s157 = sphi 0, %s141
      %s161 = sphi 0, %s161
      %s163 = sphi 0, %s161
      %s164 = sphi 0, %s163
      %s178 = sphi 0, %s164
      %s182 = sphi 0, %s182
      %s184 = sphi 0, %s182
      %s185 = sphi 0, %s184
      %s199 = sphi 0, %s185
      %s203 = sphi 0, %s203
      %s205 = sphi 0, %s203
      %s206 = sphi 0, %s205
      %s220 = sphi 0, %s206
      %s224 = sphi 0, %s224
      %s226 = sphi 0, %s224
      %s227 = sphi 0, %s226
      %s241 = sphi 0, %s227
      %s245 = sphi 0, %s245
      %s247 = sphi 0, %s245
      %s248 = sphi 0, %s247
      %s262 = sphi 0, %s248
      %s266 = sphi 0, %s266
      %s268 = sphi 0, %s266
      %s269 = sphi 0, %s268
      %s283 = sphi 0, %s269
      %s287 = sphi 0, %s287
      %s289 = sphi 0, %s287
      %s290 = sphi 0, %s289
      %s304 = sphi 0, %s290
      %s308 = sphi 0, %s308
      %s310 = sphi 0, %s308
      %s311 = sphi 0, %s310
      %s325 = sphi 0, %s311
      %s329 = sphi 0, %s329
      %s331 = sphi 0, %s329
      %s332 = sphi 0, %s331
      %s346 = sphi 0, %s332
      %s350 = sphi 0, %s350
      %s352 = sphi 0, %s350
      %s353 = sphi 0, %s352
      %s367 = sphi 0, %s353
      %s371 = sphi 0, %s371
      %s373 = sphi 0, %s371
      %s374 = sphi 0, %s373
      %s388 = sphi 0, %s374
      %s392 = sphi 0, %s392
      %s394 = sphi 0, %s392
      %s395 = sphi 0, %s394
      %s409 = sphi 0, %s395
      %s413 = sphi 0, %s413
      %s415 = sphi 0, %s413
      %s416 = sphi 0, %s415
      %s430 = sphi 0, %s416
      %s434 = sphi 0, %s434
      %s436 = sphi 0, %s434
      %s437 = sphi 0, %s436
      %s451 = sphi 0, %s437
      %s455 = sphi 0, %s455
      %s457 = sphi 0, %s455
      %s458 = sphi 0, %s457
      %s472 = sphi 0, %s458
      %s476 = sphi 0, %s476
      %s478 = sphi 0, %s476
      %s479 = sphi 0, %s478
      %s493 = sphi 0, %s479
      %s497 = sphi 0, %s497
      %s499 = sphi 0, %s497
      %s500 = sphi 0, %s499
      %s514 = sphi 0, %s500
      %s518 = sphi 0, %s518
      %s520 = sphi 0, %s518
      %s521 = sphi 0, %s520
      %s535 = sphi 0, %s521
      %s539 = sphi 0, %s539
      %s541 = sphi 0, %s539
      %s542 = sphi 0, %s541
      %s556 = sphi 0, %s542
      %s560 = sphi 0, %s560
      %s562 = sphi 0, %s560
      %s563 = sphi 0, %s562
      %s577 = sphi 0, %s563
      %s583 = sphi 0, %s585
      %s586 = sphi 0, %s583
      %s587 = sphi 0, %s586
      %s603 = sphi 0, %s587
    $region4: #{tpu_custom_call.1} parent=1 // loop_header_branch
      %36 = sbr.rel (%p34) target = $region8
    $region5: #{tpu_custom_call.1} parent=1 // loop_body
      %s38 = ssub.s32 %s33, 1
      %s39 = ssub.s32 %s33, 2
      %s46 = sadd.s32 1, %s41
      %p47 = scmp.ge.s32.totalorder %s46, 7
      %s48 = scalar_select %p47, 0, %s46
      %s49 = sadd.s32 1, %s40
      %s50 = scalar_select %p47, %s49, %s40
      %p51 = scmp.ge.s32.totalorder %s50, 2
      %s52 = scalar_select %p51, 0, %s50
      %s53 = ssub.s32 %s40, %s52
      %p54 = scmp.eq.s32.totalorder %s53, 0
      %s56 = sadd.s32 %s55, 1
      %s57 = scalar_select %p54, %s55, %s56
      %p60 = pneg %p54
      %p61 = scmp.eq.s32.totalorder %s33, 13
      %p62 = por %p60, %p61
      %p63 = scmp.ne.s32.totalorder %s55, %s58
      %p64 = scmp.eq.s32.totalorder %s33, 0
      %p65 = por %p63, %p64
      %p66 = scmp.ne.s32.totalorder %s55, %s58
      %p67 = scmp.eq.s32.totalorder %s38, 13
      %p68 = por %p66, %p67
      %p69 = scmp.ne.s32.totalorder %s58, %s59
      %p70 = scmp.eq.s32.totalorder %s38, 0
      %p71 = por %p69, %p70
      %p72 = scmp.ne.s32.totalorder %s58, %s59
      %p73 = scmp.eq.s32.totalorder %s39, 13
      %p74 = por %p72, %p73
      %p76 = scmp.ne.s32.totalorder %s59, %s75
      %p77 = scmp.eq.s32.totalorder %s39, 0
      %p78 = por %p76, %p77
      %s79 = ssub.s32 %s40, %s52
      %p80 = scmp.eq.s32.totalorder %s79, 0
      %s82 = sadd.s32 %s81, 1
      %s83 = scalar_select %p80, %s81, %s82
      %p86 = pneg %p80
      %p87 = scmp.eq.s32.totalorder %s33, 13
      %p88 = por %p86, %p87
      %p89 = scmp.ne.s32.totalorder %s81, %s84
      %p90 = scmp.eq.s32.totalorder %s33, 0
      %p91 = por %p89, %p90
      %p92 = scmp.ne.s32.totalorder %s81, %s84
      %p93 = scmp.eq.s32.totalorder %s38, 13
      %p94 = por %p92, %p93
      %p95 = scmp.ne.s32.totalorder %s84, %s85
      %p96 = scmp.eq.s32.totalorder %s38, 0
      %p97 = por %p95, %p96
      %p98 = scmp.ne.s32.totalorder %s84, %s85
      %p99 = scmp.eq.s32.totalorder %s39, 13
      %p100 = por %p98, %p99
      %p102 = scmp.ne.s32.totalorder %s85, %s101
      %p103 = scmp.eq.s32.totalorder %s39, 0
      %p104 = por %p102, %p103
      %s105 = ssub.s32 %s41, %s48
      %s106 = ssub.s32 %s40, %s52
      %s107 = sor.u32 %s105, %s106
      %p108 = scmp.eq.s32.totalorder %s107, 0
      %s110 = sadd.s32 %s109, 1
      %s111 = scalar_select %p108, %s109, %s110
      %p114 = pneg %p108
      %p115 = scmp.eq.s32.totalorder %s33, 13
      %p116 = por %p114, %p115
      %p117 = scmp.ne.s32.totalorder %s109, %s112
      %p118 = scmp.eq.s32.totalorder %s33, 0
      %p119 = por %p117, %p118
      %p120 = scmp.ne.s32.totalorder %s109, %s112
      %p121 = scmp.eq.s32.totalorder %s38, 13
      %p122 = por %p120, %p121
      %p123 = scmp.ne.s32.totalorder %s112, %s113
      %p124 = scmp.eq.s32.totalorder %s38, 0
      %p125 = por %p123, %p124
      %p126 = scmp.ne.s32.totalorder %s112, %s113
      %p127 = scmp.eq.s32.totalorder %s39, 13
      %p128 = por %p126, %p127
      %p130 = scmp.ne.s32.totalorder %s113, %s129
      %p131 = scmp.eq.s32.totalorder %s39, 0
      %p132 = por %p130, %p131
      %s133 = ssub.s32 %s41, %s48
      %s134 = ssub.s32 %s40, %s52
      %s135 = sor.u32 %s133, %s134
      %p136 = scmp.eq.s32.totalorder %s135, 0
      %s138 = sadd.s32 %s137, 1
      %s139 = scalar_select %p136, %s137, %s138
      %p142 = pneg %p136
      %p143 = scmp.eq.s32.totalorder %s33, 13
      %p144 = por %p142, %p143
      %p145 = scmp.ne.s32.totalorder %s137, %s140
      %p146 = scmp.eq.s32.totalorder %s33, 0
      %p147 = por %p145, %p146
      %p148 = scmp.ne.s32.totalorder %s137, %s140
      %p149 = scmp.eq.s32.totalorder %s38, 13
      %p150 = por %p148, %p149
      %p151 = scmp.ne.s32.totalorder %s140, %s141
      %p152 = scmp.eq.s32.totalorder %s38, 0
      %p153 = por %p151, %p152
      %p154 = scmp.ne.s32.totalorder %s140, %s141
      %p155 = scmp.eq.s32.totalorder %s39, 13
      %p156 = por %p154, %p155
      %p158 = scmp.ne.s32.totalorder %s141, %s157
      %p159 = scmp.eq.s32.totalorder %s39, 0
      %p160 = por %p158, %p159
      %s162 = sadd.s32 %s161, 1
      %p165 = scmp.eq.s32.totalorder %s33, 13
      %p166 = scmp.ne.s32.totalorder %s161, %s163
      %p167 = scmp.eq.s32.totalorder %s33, 0
      %p168 = por %p166, %p167
      %p169 = scmp.ne.s32.totalorder %s161, %s163
      %p170 = scmp.eq.s32.totalorder %s38, 13
      %p171 = por %p169, %p170
      %p172 = scmp.ne.s32.totalorder %s163, %s164
      %p173 = scmp.eq.s32.totalorder %s38, 0
      %p174 = por %p172, %p173
      %p175 = scmp.ne.s32.totalorder %s163, %s164
      %p176 = scmp.eq.s32.totalorder %s39, 13
      %p177 = por %p175, %p176
      %p179 = scmp.ne.s32.totalorder %s164, %s178
      %p180 = scmp.eq.s32.totalorder %s39, 0
      %p181 = por %p179, %p180
      %s183 = sadd.s32 %s182, 1
      %p186 = scmp.eq.s32.totalorder %s33, 13
      %p187 = scmp.ne.s32.totalorder %s182, %s184
      %p188 = scmp.eq.s32.totalorder %s33, 0
      %p189 = por %p187, %p188
      %p190 = scmp.ne.s32.totalorder %s182, %s184
      %p191 = scmp.eq.s32.totalorder %s38, 13
      %p192 = por %p190, %p191
      %p193 = scmp.ne.s32.totalorder %s184, %s185
      %p194 = scmp.eq.s32.totalorder %s38, 0
      %p195 = por %p193, %p194
      %p196 = scmp.ne.s32.totalorder %s184, %s185
      %p197 = scmp.eq.s32.totalorder %s39, 13
      %p198 = por %p196, %p197
      %p200 = scmp.ne.s32.totalorder %s185, %s199
      %p201 = scmp.eq.s32.totalorder %s39, 0
      %p202 = por %p200, %p201
      %s204 = sadd.s32 %s203, 1
      %p207 = scmp.eq.s32.totalorder %s33, 13
      %p208 = scmp.ne.s32.totalorder %s203, %s205
      %p209 = scmp.eq.s32.totalorder %s33, 0
      %p210 = por %p208, %p209
      %p211 = scmp.ne.s32.totalorder %s203, %s205
      %p212 = scmp.eq.s32.totalorder %s38, 13
      %p213 = por %p211, %p212
      %p214 = scmp.ne.s32.totalorder %s205, %s206
      %p215 = scmp.eq.s32.totalorder %s38, 0
      %p216 = por %p214, %p215
      %p217 = scmp.ne.s32.totalorder %s205, %s206
      %p218 = scmp.eq.s32.totalorder %s39, 13
      %p219 = por %p217, %p218
      %p221 = scmp.ne.s32.totalorder %s206, %s220
      %p222 = scmp.eq.s32.totalorder %s39, 0
      %p223 = por %p221, %p222
      %s225 = sadd.s32 %s224, 1
      %p228 = scmp.eq.s32.totalorder %s33, 13
      %p229 = scmp.ne.s32.totalorder %s224, %s226
      %p230 = scmp.eq.s32.totalorder %s33, 0
      %p231 = por %p229, %p230
      %p232 = scmp.ne.s32.totalorder %s224, %s226
      %p233 = scmp.eq.s32.totalorder %s38, 13
      %p234 = por %p232, %p233
      %p235 = scmp.ne.s32.totalorder %s226, %s227
      %p236 = scmp.eq.s32.totalorder %s38, 0
      %p237 = por %p235, %p236
      %p238 = scmp.ne.s32.totalorder %s226, %s227
      %p239 = scmp.eq.s32.totalorder %s39, 13
      %p240 = por %p238, %p239
      %p242 = scmp.ne.s32.totalorder %s227, %s241
      %p243 = scmp.eq.s32.totalorder %s39, 0
      %p244 = por %p242, %p243
      %s246 = sadd.s32 %s245, 1
      %p249 = scmp.eq.s32.totalorder %s33, 13
      %p250 = scmp.ne.s32.totalorder %s245, %s247
      %p251 = scmp.eq.s32.totalorder %s33, 0
      %p252 = por %p250, %p251
      %p253 = scmp.ne.s32.totalorder %s245, %s247
      %p254 = scmp.eq.s32.totalorder %s38, 13
      %p255 = por %p253, %p254
      %p256 = scmp.ne.s32.totalorder %s247, %s248
      %p257 = scmp.eq.s32.totalorder %s38, 0
      %p258 = por %p256, %p257
      %p259 = scmp.ne.s32.totalorder %s247, %s248
      %p260 = scmp.eq.s32.totalorder %s39, 13
      %p261 = por %p259, %p260
      %p263 = scmp.ne.s32.totalorder %s248, %s262
      %p264 = scmp.eq.s32.totalorder %s39, 0
      %p265 = por %p263, %p264
      %s267 = sadd.s32 %s266, 1
      %p270 = scmp.eq.s32.totalorder %s33, 13
      %p271 = scmp.ne.s32.totalorder %s266, %s268
      %p272 = scmp.eq.s32.totalorder %s33, 0
      %p273 = por %p271, %p272
      %p274 = scmp.ne.s32.totalorder %s266, %s268
      %p275 = scmp.eq.s32.totalorder %s38, 13
      %p276 = por %p274, %p275
      %p277 = scmp.ne.s32.totalorder %s268, %s269
      %p278 = scmp.eq.s32.totalorder %s38, 0
      %p279 = por %p277, %p278
      %p280 = scmp.ne.s32.totalorder %s268, %s269
      %p281 = scmp.eq.s32.totalorder %s39, 13
      %p282 = por %p280, %p281
      %p284 = scmp.ne.s32.totalorder %s269, %s283
      %p285 = scmp.eq.s32.totalorder %s39, 0
      %p286 = por %p284, %p285
      %s288 = sadd.s32 %s287, 1
      %p291 = scmp.eq.s32.totalorder %s33, 13
      %p292 = scmp.ne.s32.totalorder %s287, %s289
      %p293 = scmp.eq.s32.totalorder %s33, 0
      %p294 = por %p292, %p293
      %p295 = scmp.ne.s32.totalorder %s287, %s289
      %p296 = scmp.eq.s32.totalorder %s38, 13
      %p297 = por %p295, %p296
      %p298 = scmp.ne.s32.totalorder %s289, %s290
      %p299 = scmp.eq.s32.totalorder %s38, 0
      %p300 = por %p298, %p299
      %p301 = scmp.ne.s32.totalorder %s289, %s290
      %p302 = scmp.eq.s32.totalorder %s39, 13
      %p303 = por %p301, %p302
      %p305 = scmp.ne.s32.totalorder %s290, %s304
      %p306 = scmp.eq.s32.totalorder %s39, 0
      %p307 = por %p305, %p306
      %s309 = sadd.s32 %s308, 1
      %p312 = scmp.eq.s32.totalorder %s33, 13
      %p313 = scmp.ne.s32.totalorder %s308, %s310
      %p314 = scmp.eq.s32.totalorder %s33, 0
      %p315 = por %p313, %p314
      %p316 = scmp.ne.s32.totalorder %s308, %s310
      %p317 = scmp.eq.s32.totalorder %s38, 13
      %p318 = por %p316, %p317
      %p319 = scmp.ne.s32.totalorder %s310, %s311
      %p320 = scmp.eq.s32.totalorder %s38, 0
      %p321 = por %p319, %p320
      %p322 = scmp.ne.s32.totalorder %s310, %s311
      %p323 = scmp.eq.s32.totalorder %s39, 13
      %p324 = por %p322, %p323
      %p326 = scmp.ne.s32.totalorder %s311, %s325
      %p327 = scmp.eq.s32.totalorder %s39, 0
      %p328 = por %p326, %p327
      %s330 = sadd.s32 %s329, 1
      %p333 = scmp.eq.s32.totalorder %s33, 13
      %p334 = scmp.ne.s32.totalorder %s329, %s331
      %p335 = scmp.eq.s32.totalorder %s33, 0
      %p336 = por %p334, %p335
      %p337 = scmp.ne.s32.totalorder %s329, %s331
      %p338 = scmp.eq.s32.totalorder %s38, 13
      %p339 = por %p337, %p338
      %p340 = scmp.ne.s32.totalorder %s331, %s332
      %p341 = scmp.eq.s32.totalorder %s38, 0
      %p342 = por %p340, %p341
      %p343 = scmp.ne.s32.totalorder %s331, %s332
      %p344 = scmp.eq.s32.totalorder %s39, 13
      %p345 = por %p343, %p344
      %p347 = scmp.ne.s32.totalorder %s332, %s346
      %p348 = scmp.eq.s32.totalorder %s39, 0
      %p349 = por %p347, %p348
      %s351 = sadd.s32 %s350, 1
      %p354 = scmp.eq.s32.totalorder %s33, 13
      %p355 = scmp.ne.s32.totalorder %s350, %s352
      %p356 = scmp.eq.s32.totalorder %s33, 0
      %p357 = por %p355, %p356
      %p358 = scmp.ne.s32.totalorder %s350, %s352
      %p359 = scmp.eq.s32.totalorder %s38, 13
      %p360 = por %p358, %p359
      %p361 = scmp.ne.s32.totalorder %s352, %s353
      %p362 = scmp.eq.s32.totalorder %s38, 0
      %p363 = por %p361, %p362
      %p364 = scmp.ne.s32.totalorder %s352, %s353
      %p365 = scmp.eq.s32.totalorder %s39, 13
      %p366 = por %p364, %p365
      %p368 = scmp.ne.s32.totalorder %s353, %s367
      %p369 = scmp.eq.s32.totalorder %s39, 0
      %p370 = por %p368, %p369
      %s372 = sadd.s32 %s371, 1
      %p375 = scmp.eq.s32.totalorder %s33, 13
      %p376 = scmp.ne.s32.totalorder %s371, %s373
      %p377 = scmp.eq.s32.totalorder %s33, 0
      %p378 = por %p376, %p377
      %p379 = scmp.ne.s32.totalorder %s371, %s373
      %p380 = scmp.eq.s32.totalorder %s38, 13
      %p381 = por %p379, %p380
      %p382 = scmp.ne.s32.totalorder %s373, %s374
      %p383 = scmp.eq.s32.totalorder %s38, 0
      %p384 = por %p382, %p383
      %p385 = scmp.ne.s32.totalorder %s373, %s374
      %p386 = scmp.eq.s32.totalorder %s39, 13
      %p387 = por %p385, %p386
      %p389 = scmp.ne.s32.totalorder %s374, %s388
      %p390 = scmp.eq.s32.totalorder %s39, 0
      %p391 = por %p389, %p390
      %s393 = sadd.s32 %s392, 1
      %p396 = scmp.eq.s32.totalorder %s33, 13
      %p397 = scmp.ne.s32.totalorder %s392, %s394
      %p398 = scmp.eq.s32.totalorder %s33, 0
      %p399 = por %p397, %p398
      %p400 = scmp.ne.s32.totalorder %s392, %s394
      %p401 = scmp.eq.s32.totalorder %s38, 13
      %p402 = por %p400, %p401
      %p403 = scmp.ne.s32.totalorder %s394, %s395
      %p404 = scmp.eq.s32.totalorder %s38, 0
      %p405 = por %p403, %p404
      %p406 = scmp.ne.s32.totalorder %s394, %s395
      %p407 = scmp.eq.s32.totalorder %s39, 13
      %p408 = por %p406, %p407
      %p410 = scmp.ne.s32.totalorder %s395, %s409
      %p411 = scmp.eq.s32.totalorder %s39, 0
      %p412 = por %p410, %p411
      %s414 = sadd.s32 %s413, 1
      %p417 = scmp.eq.s32.totalorder %s33, 13
      %p418 = scmp.ne.s32.totalorder %s413, %s415
      %p419 = scmp.eq.s32.totalorder %s33, 0
      %p420 = por %p418, %p419
      %p421 = scmp.ne.s32.totalorder %s413, %s415
      %p422 = scmp.eq.s32.totalorder %s38, 13
      %p423 = por %p421, %p422
      %p424 = scmp.ne.s32.totalorder %s415, %s416
      %p425 = scmp.eq.s32.totalorder %s38, 0
      %p426 = por %p424, %p425
      %p427 = scmp.ne.s32.totalorder %s415, %s416
      %p428 = scmp.eq.s32.totalorder %s39, 13
      %p429 = por %p427, %p428
      %p431 = scmp.ne.s32.totalorder %s416, %s430
      %p432 = scmp.eq.s32.totalorder %s39, 0
      %p433 = por %p431, %p432
      %s435 = sadd.s32 %s434, 1
      %p438 = scmp.eq.s32.totalorder %s33, 13
      %p439 = scmp.ne.s32.totalorder %s434, %s436
      %p440 = scmp.eq.s32.totalorder %s33, 0
      %p441 = por %p439, %p440
      %p442 = scmp.ne.s32.totalorder %s434, %s436
      %p443 = scmp.eq.s32.totalorder %s38, 13
      %p444 = por %p442, %p443
      %p445 = scmp.ne.s32.totalorder %s436, %s437
      %p446 = scmp.eq.s32.totalorder %s38, 0
      %p447 = por %p445, %p446
      %p448 = scmp.ne.s32.totalorder %s436, %s437
      %p449 = scmp.eq.s32.totalorder %s39, 13
      %p450 = por %p448, %p449
      %p452 = scmp.ne.s32.totalorder %s437, %s451
      %p453 = scmp.eq.s32.totalorder %s39, 0
      %p454 = por %p452, %p453
      %s456 = sadd.s32 %s455, 1
      %p459 = scmp.eq.s32.totalorder %s33, 13
      %p460 = scmp.ne.s32.totalorder %s455, %s457
      %p461 = scmp.eq.s32.totalorder %s33, 0
      %p462 = por %p460, %p461
      %p463 = scmp.ne.s32.totalorder %s455, %s457
      %p464 = scmp.eq.s32.totalorder %s38, 13
      %p465 = por %p463, %p464
      %p466 = scmp.ne.s32.totalorder %s457, %s458
      %p467 = scmp.eq.s32.totalorder %s38, 0
      %p468 = por %p466, %p467
      %p469 = scmp.ne.s32.totalorder %s457, %s458
      %p470 = scmp.eq.s32.totalorder %s39, 13
      %p471 = por %p469, %p470
      %p473 = scmp.ne.s32.totalorder %s458, %s472
      %p474 = scmp.eq.s32.totalorder %s39, 0
      %p475 = por %p473, %p474
      %s477 = sadd.s32 %s476, 1
      %p480 = scmp.eq.s32.totalorder %s33, 13
      %p481 = scmp.ne.s32.totalorder %s476, %s478
      %p482 = scmp.eq.s32.totalorder %s33, 0
      %p483 = por %p481, %p482
      %p484 = scmp.ne.s32.totalorder %s476, %s478
      %p485 = scmp.eq.s32.totalorder %s38, 13
      %p486 = por %p484, %p485
      %p487 = scmp.ne.s32.totalorder %s478, %s479
      %p488 = scmp.eq.s32.totalorder %s38, 0
      %p489 = por %p487, %p488
      %p490 = scmp.ne.s32.totalorder %s478, %s479
      %p491 = scmp.eq.s32.totalorder %s39, 13
      %p492 = por %p490, %p491
      %p494 = scmp.ne.s32.totalorder %s479, %s493
      %p495 = scmp.eq.s32.totalorder %s39, 0
      %p496 = por %p494, %p495
      %s498 = sadd.s32 %s497, 1
      %p501 = scmp.eq.s32.totalorder %s33, 13
      %p502 = scmp.ne.s32.totalorder %s497, %s499
      %p503 = scmp.eq.s32.totalorder %s33, 0
      %p504 = por %p502, %p503
      %p505 = scmp.ne.s32.totalorder %s497, %s499
      %p506 = scmp.eq.s32.totalorder %s38, 13
      %p507 = por %p505, %p506
      %p508 = scmp.ne.s32.totalorder %s499, %s500
      %p509 = scmp.eq.s32.totalorder %s38, 0
      %p510 = por %p508, %p509
      %p511 = scmp.ne.s32.totalorder %s499, %s500
      %p512 = scmp.eq.s32.totalorder %s39, 13
      %p513 = por %p511, %p512
      %p515 = scmp.ne.s32.totalorder %s500, %s514
      %p516 = scmp.eq.s32.totalorder %s39, 0
      %p517 = por %p515, %p516
      %s519 = sadd.s32 %s518, 1
      %p522 = scmp.eq.s32.totalorder %s33, 13
      %p523 = scmp.ne.s32.totalorder %s518, %s520
      %p524 = scmp.eq.s32.totalorder %s33, 0
      %p525 = por %p523, %p524
      %p526 = scmp.ne.s32.totalorder %s518, %s520
      %p527 = scmp.eq.s32.totalorder %s38, 13
      %p528 = por %p526, %p527
      %p529 = scmp.ne.s32.totalorder %s520, %s521
      %p530 = scmp.eq.s32.totalorder %s38, 0
      %p531 = por %p529, %p530
      %p532 = scmp.ne.s32.totalorder %s520, %s521
      %p533 = scmp.eq.s32.totalorder %s39, 13
      %p534 = por %p532, %p533
      %p536 = scmp.ne.s32.totalorder %s521, %s535
      %p537 = scmp.eq.s32.totalorder %s39, 0
      %p538 = por %p536, %p537
      %s540 = sadd.s32 %s539, 1
      %p543 = scmp.eq.s32.totalorder %s33, 13
      %p544 = scmp.ne.s32.totalorder %s539, %s541
      %p545 = scmp.eq.s32.totalorder %s33, 0
      %p546 = por %p544, %p545
      %p547 = scmp.ne.s32.totalorder %s539, %s541
      %p548 = scmp.eq.s32.totalorder %s38, 13
      %p549 = por %p547, %p548
      %p550 = scmp.ne.s32.totalorder %s541, %s542
      %p551 = scmp.eq.s32.totalorder %s38, 0
      %p552 = por %p550, %p551
      %p553 = scmp.ne.s32.totalorder %s541, %s542
      %p554 = scmp.eq.s32.totalorder %s39, 13
      %p555 = por %p553, %p554
      %p557 = scmp.ne.s32.totalorder %s542, %s556
      %p558 = scmp.eq.s32.totalorder %s39, 0
      %p559 = por %p557, %p558
      %s561 = sadd.s32 %s560, 1
      %p564 = scmp.eq.s32.totalorder %s33, 13
      %p565 = scmp.ne.s32.totalorder %s560, %s562
      %p566 = scmp.eq.s32.totalorder %s33, 0
      %p567 = por %p565, %p566
      %p568 = scmp.ne.s32.totalorder %s560, %s562
      %p569 = scmp.eq.s32.totalorder %s38, 13
      %p570 = por %p568, %p569
      %p571 = scmp.ne.s32.totalorder %s562, %s563
      %p572 = scmp.eq.s32.totalorder %s38, 0
      %p573 = por %p571, %p572
      %p574 = scmp.ne.s32.totalorder %s562, %s563
      %p575 = scmp.eq.s32.totalorder %s39, 13
      %p576 = por %p574, %p575
      %p578 = scmp.ne.s32.totalorder %s563, %s577
      %p579 = scmp.eq.s32.totalorder %s39, 0
      %p580 = por %p578, %p579
      %s581 = ssub.s32 %s40, %s52
      %p582 = scmp.eq.s32.totalorder %s581, 0
      %s584 = sadd.s32 %s583, 1
      %s585 = scalar_select %p582, %s583, %s584
      %p588 = pneg %p582
      %p589 = scmp.eq.s32.totalorder %s33, 13
      %p590 = por %p588, %p589
      %p591 = scmp.ne.s32.totalorder %s583, %s586
      %p592 = scmp.eq.s32.totalorder %s33, 0
      %p593 = por %p591, %p592
      %p594 = scmp.ne.s32.totalorder %s583, %s586
      %p595 = scmp.eq.s32.totalorder %s38, 13
      %p596 = por %p594, %p595
      %p597 = scmp.ne.s32.totalorder %s586, %s587
      %p598 = scmp.eq.s32.totalorder %s38, 0
      %p599 = por %p597, %p598
      %p600 = scmp.ne.s32.totalorder %s586, %s587
      %p601 = scmp.eq.s32.totalorder %s39, 13
      %p602 = por %p600, %p601
      %p604 = scmp.ne.s32.totalorder %s587, %s603
      %p605 = scmp.eq.s32.totalorder %s39, 0
      %p606 = por %p604, %p605
      %p607 = scmp.le.s32.totalorder 1, %s33
      %p608 = scmp.lt.s32.totalorder %s33, 15
      %p609 = pnand %p607, %p608
      %p610 = pneg %p609
      // Predicated region
      $region9: #{tpu_custom_call.1} parent=5 // pred_check
        _
      $region10: #{tpu_custom_call.1} parent=5 // pred_check_branch
        %612 = sbr.rel (%p609) target = $region12
      $region11: #{tpu_custom_call.1} parent=5 // pred_region
        %s613 = ssub.s32 %s33, 1
        // Predicated region
        $region13: #{tpu_custom_call.1} parent=11 // pred_check
          %p614 = pneg %p174
        $region14: #{tpu_custom_call.1} parent=11 // pred_check_branch
          %616 = sbr.rel (%p614) target = $region16
        $region15: #{tpu_custom_call.1} parent=11 // pred_region
          _
        $region16: #{tpu_custom_call.1} parent=11 // pred_fallthru
          _
        // Predicated region
        $region17: #{tpu_custom_call.1} parent=11 // pred_check
          %p617 = pneg %p195
        $region18: #{tpu_custom_call.1} parent=11 // pred_check_branch
          %619 = sbr.rel (%p617) target = $region20
        $region19: #{tpu_custom_call.1} parent=11 // pred_region
          _
        $region20: #{tpu_custom_call.1} parent=11 // pred_fallthru
          _
        // Predicated region
        $region21: #{tpu_custom_call.1} parent=11 // pred_check
          %p620 = pneg %p216
        $region22: #{tpu_custom_call.1} parent=11 // pred_check_branch
          %622 = sbr.rel (%p620) target = $region24
        $region23: #{tpu_custom_call.1} parent=11 // pred_region
          _
        $region24: #{tpu_custom_call.1} parent=11 // pred_fallthru
          _
        // Predicated region
        $region25: #{tpu_custom_call.1} parent=11 // pred_check
          %p623 = pneg %p237
        $region26: #{tpu_custom_call.1} parent=11 // pred_check_branch
          %625 = sbr.rel (%p623) target = $region28
        $region27: #{tpu_custom_call.1} parent=11 // pred_region
          _
        $region28: #{tpu_custom_call.1} parent=11 // pred_fallthru
          _
        // Predicated region
        $region29: #{tpu_custom_call.1} parent=11 // pred_check
          %p626 = pneg %p258
        $region30: #{tpu_custom_call.1} parent=11 // pred_check_branch
          %628 = sbr.rel (%p626) target = $region32
        $region31: #{tpu_custom_call.1} parent=11 // pred_region
          _
        $region32: #{tpu_custom_call.1} parent=11 // pred_fallthru
          _
        // Predicated region
        $region33: #{tpu_custom_call.1} parent=11 // pred_check
          %p629 = pneg %p279
        $region34: #{tpu_custom_call.1} parent=11 // pred_check_branch
          %631 = sbr.rel (%p629) target = $region36
        $region35: #{tpu_custom_call.1} parent=11 // pred_region
          _
        $region36: #{tpu_custom_call.1} parent=11 // pred_fallthru
          _
        // Predicated region
        $region37: #{tpu_custom_call.1} parent=11 // pred_check
          %p632 = pneg %p300
        $region38: #{tpu_custom_call.1} parent=11 // pred_check_branch
          %634 = sbr.rel (%p632) target = $region40
        $region39: #{tpu_custom_call.1} parent=11 // pred_region
          _
        $region40: #{tpu_custom_call.1} parent=11 // pred_fallthru
          _
        // Predicated region
        $region41: #{tpu_custom_call.1} parent=11 // pred_check
          %p635 = pneg %p321
        $region42: #{tpu_custom_call.1} parent=11 // pred_check_branch
          %637 = sbr.rel (%p635) target = $region44
        $region43: #{tpu_custom_call.1} parent=11 // pred_region
          _
        $region44: #{tpu_custom_call.1} parent=11 // pred_fallthru
          _
        // Predicated region
        $region45: #{tpu_custom_call.1} parent=11 // pred_check
          %p638 = pneg %p342
        $region46: #{tpu_custom_call.1} parent=11 // pred_check_branch
          %640 = sbr.rel (%p638) target = $region48
        $region47: #{tpu_custom_call.1} parent=11 // pred_region
          _
        $region48: #{tpu_custom_call.1} parent=11 // pred_fallthru
          _
        // Predicated region
        $region49: #{tpu_custom_call.1} parent=11 // pred_check
          %p641 = pneg %p363
        $region50: #{tpu_custom_call.1} parent=11 // pred_check_branch
          %643 = sbr.rel (%p641) target = $region52
        $region51: #{tpu_custom_call.1} parent=11 // pred_region
          _
        $region52: #{tpu_custom_call.1} parent=11 // pred_fallthru
          _
        // Predicated region
        $region53: #{tpu_custom_call.1} parent=11 // pred_check
          %p644 = pneg %p384
        $region54: #{tpu_custom_call.1} parent=11 // pred_check_branch
          %646 = sbr.rel (%p644) target = $region56
        $region55: #{tpu_custom_call.1} parent=11 // pred_region
          _
        $region56: #{tpu_custom_call.1} parent=11 // pred_fallthru
          _
        // Predicated region
        $region57: #{tpu_custom_call.1} parent=11 // pred_check
          %p647 = pneg %p405
        $region58: #{tpu_custom_call.1} parent=11 // pred_check_branch
          %649 = sbr.rel (%p647) target = $region60
        $region59: #{tpu_custom_call.1} parent=11 // pred_region
          _
        $region60: #{tpu_custom_call.1} parent=11 // pred_fallthru
          _
        // Predicated region
        $region61: #{tpu_custom_call.1} parent=11 // pred_check
          %p650 = pneg %p426
        $region62: #{tpu_custom_call.1} parent=11 // pred_check_branch
          %652 = sbr.rel (%p650) target = $region64
        $region63: #{tpu_custom_call.1} parent=11 // pred_region
          _
        $region64: #{tpu_custom_call.1} parent=11 // pred_fallthru
          _
        // Predicated region
        $region65: #{tpu_custom_call.1} parent=11 // pred_check
          %p653 = pneg %p447
        $region66: #{tpu_custom_call.1} parent=11 // pred_check_branch
          %655 = sbr.rel (%p653) target = $region68
        $region67: #{tpu_custom_call.1} parent=11 // pred_region
          _
        $region68: #{tpu_custom_call.1} parent=11 // pred_fallthru
          _
        // Predicated region
        $region69: #{tpu_custom_call.1} parent=11 // pred_check
          %p656 = pneg %p468
        $region70: #{tpu_custom_call.1} parent=11 // pred_check_branch
          %658 = sbr.rel (%p656) target = $region72
        $region71: #{tpu_custom_call.1} parent=11 // pred_region
          _
        $region72: #{tpu_custom_call.1} parent=11 // pred_fallthru
          _
        // Predicated region
        $region73: #{tpu_custom_call.1} parent=11 // pred_check
          %p659 = pneg %p489
        $region74: #{tpu_custom_call.1} parent=11 // pred_check_branch
          %661 = sbr.rel (%p659) target = $region76
        $region75: #{tpu_custom_call.1} parent=11 // pred_region
          _
        $region76: #{tpu_custom_call.1} parent=11 // pred_fallthru
          _
        // Predicated region
        $region77: #{tpu_custom_call.1} parent=11 // pred_check
          %p662 = pneg %p510
        $region78: #{tpu_custom_call.1} parent=11 // pred_check_branch
          %664 = sbr.rel (%p662) target = $region80
        $region79: #{tpu_custom_call.1} parent=11 // pred_region
          _
        $region80: #{tpu_custom_call.1} parent=11 // pred_fallthru
          _
        // Predicated region
        $region81: #{tpu_custom_call.1} parent=11 // pred_check
          %p665 = pneg %p531
        $region82: #{tpu_custom_call.1} parent=11 // pred_check_branch
          %667 = sbr.rel (%p665) target = $region84
        $region83: #{tpu_custom_call.1} parent=11 // pred_region
          _
        $region84: #{tpu_custom_call.1} parent=11 // pred_fallthru
          _
        // Predicated region
        $region85: #{tpu_custom_call.1} parent=11 // pred_check
          %p668 = pneg %p552
        $region86: #{tpu_custom_call.1} parent=11 // pred_check_branch
          %670 = sbr.rel (%p668) target = $region88
        $region87: #{tpu_custom_call.1} parent=11 // pred_region
          _
        $region88: #{tpu_custom_call.1} parent=11 // pred_fallthru
          _
        // Predicated region
        $region89: #{tpu_custom_call.1} parent=11 // pred_check
          %p671 = pneg %p573
        $region90: #{tpu_custom_call.1} parent=11 // pred_check_branch
          %673 = sbr.rel (%p671) target = $region92
        $region91: #{tpu_custom_call.1} parent=11 // pred_region
          _
        $region92: #{tpu_custom_call.1} parent=11 // pred_fallthru
          _
      $region12: #{tpu_custom_call.1} parent=5 // pred_fallthru
        _
      %p674 = scmp.lt.s32.totalorder %s33, 14
      // Predicated region
      $region93: #{tpu_custom_call.1} parent=5 // pred_check
        %p675 = pneg %p674
      $region94: #{tpu_custom_call.1} parent=5 // pred_check_branch
        %677 = sbr.rel (%p675) target = $region96
      $region95: #{tpu_custom_call.1} parent=5 // pred_region
        // Predicated region
        $region97: #{tpu_custom_call.1} parent=95 // pred_check
          %p678 = pneg %p65
        $region98: #{tpu_custom_call.1} parent=95 // pred_check_branch
          %680 = sbr.rel (%p678) target = $region100
        $region99: #{tpu_custom_call.1} parent=95 // pred_region
          %s681 = smul.u32 2, %s40
          %p682 = scmp.lt.s32.totalorder %s681, 3
          %s683 = scalar_select %p682, %s681, 3
          %s684 = smul.addr %s683, 8
          %s685 = scalar_lea.vmem %s0, %s684
          %s686 = smul.u32 2, %s40
        $region100: #{tpu_custom_call.1} parent=95 // pred_fallthru
          _
        // Predicated region
        $region101: #{tpu_custom_call.1} parent=95 // pred_check
          %p687 = pneg %p91
        $region102: #{tpu_custom_call.1} parent=95 // pred_check_branch
          %689 = sbr.rel (%p687) target = $region104
        $region103: #{tpu_custom_call.1} parent=95 // pred_region
          %s690 = smul.u32 2, %s40
          %p691 = scmp.lt.s32.totalorder %s690, 3
          %s692 = scalar_select %p691, %s690, 3
          %s693 = smul.addr %s692, 8
          %s694 = scalar_lea.vmem %s1, %s693
          %s695 = smul.u32 2, %s40
        $region104: #{tpu_custom_call.1} parent=95 // pred_fallthru
          _
        // Predicated region
        $region105: #{tpu_custom_call.1} parent=95 // pred_check
          %p696 = pneg %p119
        $region106: #{tpu_custom_call.1} parent=95 // pred_check_branch
          %698 = sbr.rel (%p696) target = $region108
        $region107: #{tpu_custom_call.1} parent=95 // pred_region
          %s699 = smul.u32 2, %s40
          %p700 = scmp.lt.s32.totalorder %s41, 6
          %s701 = scalar_select %p700, %s41, 6
          %p702 = scmp.lt.s32.totalorder %s699, 3
          %s703 = scalar_select %p702, %s699, 3
          %s704 = smul.addr %s701, 4
          %s705 = sadd.s32 %s703, %s704
          %s706 = smul.addr %s705, 4
          %s707 = scalar_lea.vmem %s2, %s706
          %s708 = smul.u32 2, %s40
        $region108: #{tpu_custom_call.1} parent=95 // pred_fallthru
          _
        // Predicated region
        $region109: #{tpu_custom_call.1} parent=95 // pred_check
          %p709 = pneg %p147
        $region110: #{tpu_custom_call.1} parent=95 // pred_check_branch
          %711 = sbr.rel (%p709) target = $region112
        $region111: #{tpu_custom_call.1} parent=95 // pred_region
          %s712 = smul.u32 2, %s40
          %p713 = scmp.lt.s32.totalorder %s41, 6
          %s714 = scalar_select %p713, %s41, 6
          %p715 = scmp.lt.s32.totalorder %s712, 3
          %s716 = scalar_select %p715, %s712, 3
          %s717 = smul.addr %s714, 4
          %s718 = sadd.s32 %s716, %s717
          %s719 = smul.addr %s718, 8
          %s720 = scalar_lea.vmem %s3, %s719
          %s721 = smul.u32 2, %s40
        $region112: #{tpu_custom_call.1} parent=95 // pred_fallthru
          _
      $region96: #{tpu_custom_call.1} parent=5 // pred_fallthru
        _
      %p722 = scmp.le.s32.totalorder 1, %s33
      %p723 = scmp.lt.s32.totalorder %s33, 15
      %p724 = pnand %p722, %p723
      %p725 = pneg %p724
      // Predicated region
      $region113: #{tpu_custom_call.1} parent=5 // pred_check
        _
      $region114: #{tpu_custom_call.1} parent=5 // pred_check_branch
        %727 = sbr.rel (%p724) target = $region116
      $region115: #{tpu_custom_call.1} parent=5 // pred_region
        %s728 = ssub.s32 %s33, 1
        %s729 = smul.u32 2, %s42
        %p730 = scmp.lt.s32.totalorder %s729, 3
        %s731 = scalar_select %p730, %s729, 3
        %s732 = smul.addr %s731, 8
        %s733 = scalar_lea.vmem %s0, %s732
        %p734 = pneg %p71
        %p735 = pneg %p68
        %s736 = smul.u32 2, %s42
        %p737 = scmp.lt.s32.totalorder %s736, 3
        %s738 = scalar_select %p737, %s736, 3
        %s739 = smul.addr %s738, 8
        %s740 = scalar_lea.vmem %s1, %s739
        %p741 = pneg %p97
        %p742 = pneg %p94
        %s743 = smul.u32 2, %s42
        %p744 = scmp.lt.s32.totalorder %s43, 6
        %s745 = scalar_select %p744, %s43, 6
        %p746 = scmp.lt.s32.totalorder %s743, 3
        %s747 = scalar_select %p746, %s743, 3
        %s748 = smul.addr %s745, 4
        %s749 = sadd.s32 %s747, %s748
        %s750 = smul.addr %s749, 4
        %s751 = scalar_lea.vmem %s2, %s750
        %p752 = pneg %p125
        %p753 = pneg %p122
        %s754 = smul.u32 2, %s42
        %p755 = scmp.lt.s32.totalorder %s43, 6
        %s756 = scalar_select %p755, %s43, 6
        %p757 = scmp.lt.s32.totalorder %s754, 3
        %s758 = scalar_select %p757, %s754, 3
        %s759 = smul.addr %s756, 4
        %s760 = sadd.s32 %s758, %s759
        %s761 = smul.addr %s760, 8
        %s762 = scalar_lea.vmem %s3, %s761
        %p763 = pneg %p153
        %p764 = pneg %p150
        %p765 = pneg %p174
        %p766 = pneg %p171
        %p767 = pneg %p195
        %p768 = pneg %p192
        %p769 = pneg %p216
        %p770 = pneg %p213
        %p771 = pneg %p237
        %p772 = pneg %p234
        %p773 = pneg %p258
        %p774 = pneg %p255
        %p775 = pneg %p279
        %p776 = pneg %p276
        %p777 = pneg %p300
        %p778 = pneg %p297
        %p779 = pneg %p321
        %p780 = pneg %p318
        %p781 = pneg %p342
        %p782 = pneg %p339
        %p783 = pneg %p363
        %p784 = pneg %p360
        %p785 = pneg %p384
        %p786 = pneg %p381
        %p787 = pneg %p405
        %p788 = pneg %p402
        %p789 = pneg %p426
        %p790 = pneg %p423
        %p791 = pneg %p447
        %p792 = pneg %p444
        %p793 = pneg %p468
        %p794 = pneg %p465
        %p795 = pneg %p489
        %p796 = pneg %p486
        %p797 = pneg %p510
        %p798 = pneg %p507
        %p799 = pneg %p531
        %p800 = pneg %p528
        %p801 = pneg %p552
        %p802 = pneg %p549
        %p803 = pneg %p573
        %p804 = pneg %p570
        %p805 = pneg %p599
        %p806 = pneg %p596
        %s807 = sand.u32 %s586, 1
        %s808 = scalar_lea.sflag [#allocation7], %s807
        %s809 = sand.u32 %s586, 1
        %s810 = smul.addr %s809, 16
        %s811 = scalar_lea.vmem [#allocation6], %s810
        %s812 = smul.u32 2, %s42
        %p813 = scmp.lt.s32.totalorder %s812, 3
        %s814 = scalar_select %p813, %s812, 3
        %s815 = smul.addr %s814, 8
        %s816 = scalar_lea.vmem %s0, %s815
        %s817 = smul.u32 2, %s42
        %s818 = smul.u32 2, %s42
        %p819 = scmp.lt.s32.totalorder %s818, 3
        %s820 = scalar_select %p819, %s818, 3
        %s821 = smul.addr %s820, 8
        %s822 = scalar_lea.vmem %s1, %s821
        %s823 = smul.u32 2, %s42
        %s824 = smul.u32 2, %s42
        %p825 = scmp.lt.s32.totalorder %s43, 6
        %s826 = scalar_select %p825, %s43, 6
        %p827 = scmp.lt.s32.totalorder %s824, 3
        %s828 = scalar_select %p827, %s824, 3
        %s829 = smul.addr %s826, 4
        %s830 = sadd.s32 %s828, %s829
        %s831 = smul.addr %s830, 4
        %s832 = scalar_lea.vmem %s2, %s831
        %s833 = smul.u32 2, %s42
        %s834 = smul.u32 2, %s42
        %p835 = scmp.lt.s32.totalorder %s43, 6
        %s836 = scalar_select %p835, %s43, 6
        %p837 = scmp.lt.s32.totalorder %s834, 3
        %s838 = scalar_select %p837, %s834, 3
        %s839 = smul.addr %s836, 4
        %s840 = sadd.s32 %s838, %s839
        %s841 = smul.addr %s840, 8
        %s842 = scalar_lea.vmem %s3, %s841
        %s843 = smul.u32 2, %s42
        %s844 = smul.u32 2, %s42
        %p846 = scmp.eq.s32.totalorder %s43, 0
        // Predicated region
        $region117: #{tpu_custom_call.1} parent=115 // pred_check
          %p847 = pneg %p846
        $region118: #{tpu_custom_call.1} parent=115 // pred_check_branch
          %849 = sbr.rel (%p847) target = $region120
        $region119: #{tpu_custom_call.1} parent=115 // pred_region
          %v850 = vld [vmem:[%s816] sm:$0xff]
          %v851 = vld [vmem:[%s816 + $0x8] sm:$0xff]
          %v852 = vld [vmem:[%s4] sm:$0xf]
          %v853 = vld [vmem:[%s4 + $0x4] sm:$0xf]
          %v854 = vld [vmem:[%s4 + $0x8] sm:$0xf]
          %v855 = vld [vmem:[%s4 + $0xc] sm:$0xf]
          %v856 = vpack.c.bf16 %v851, %v850
          %v861 = vunpack.c.l.b16 %v852
          %v862 = vunpack.c.l.b16 %v853
          %v863 = vunpack.c.l.b16 %v854
          %v864 = vunpack.c.l.b16 %v855
          %v865 = vpack.c.b16 %v862, %v861
          %v866 = vpack.c.b16 %v864, %v863
          %vm869 = vcmask 261120
          %v871 = vsel %vm869, %v856, 0
          %873 = vmatprep.subr.bf16.mxu0 0
          %874 = vmatpush1.bf16.msra.mxu0 %v865
          %875 = vmatprep.subr.bf16.mxu0 0
          %876 = vmatpush1.bf16.msra.mxu0 %v866
          %877 = vmatprep.subr.bf16.mxu0 0
          %878 = vmatpush1.bf16.msra.mxu0 0
          %879 = vmatprep.subr.bf16.mxu0 0
          %880 = vmatpush1.bf16.msra.mxu0 0
          %881 = vmatprep.subr.bf16.mxu0 0
          %882 = vmatpush1.bf16.msra.mxu0 0
          %883 = vmatprep.subr.bf16.mxu0 0
          %884 = vmatpush1.bf16.msra.mxu0 0
          %885 = vmatprep.subr.bf16.mxu0 0
          %886 = vmatpush1.bf16.msra.mxu0 0
          %887 = vmatprep.subr.bf16.mxu0 0
          %888 = vmatpush1.bf16.msra.mxu0 0
          %889 = vmatprep.subr.bf16.mxu0 0
          %890 = vmatpush1.bf16.msra.mxu0 0
          %891 = vmatprep.subr.bf16.mxu0 0
          %892 = vmatpush1.bf16.msra.mxu0 0
          %893 = vmatprep.subr.bf16.mxu0 0
          %894 = vmatpush1.bf16.msra.mxu0 0
          %895 = vmatprep.subr.bf16.mxu0 0
          %896 = vmatpush1.bf16.msra.mxu0 0
          %897 = vmatprep.subr.bf16.mxu0 0
          %898 = vmatpush1.bf16.msra.mxu0 0
          %899 = vmatprep.subr.bf16.mxu0 0
          %900 = vmatpush1.bf16.msra.mxu0 0
          %901 = vmatprep.subr.bf16.mxu0 0
          %902 = vmatpush1.bf16.msra.mxu0 0
          %903 = vmatprep.subr.bf16.mxu0 0
          %904 = vmatpush1.bf16.msra.mxu0 0
          %905 = vmatprep.mubr.bf16.mxu0 0
          %906 = vmatmul.mubr.bf16.gmra.mrb[0].mxu0 %v871
          %v907 = vpop.f32.mrb[0].mxu0
          %v908 = vadd.f32 0.0, %v907
          %v909 = vpop.f32.mrb[0].mxu0
          %v910 = vpop.f32.mrb[0].mxu0
          %v911 = vadd.f32 0.0, %v910
          %v912 = vpop.f32.mrb[0].mxu0
          %913 = vdwg.mxu0
          %914 = vst.msk [vmem:[#allocation2] sm:$0xff] %vm869, %v908
          %915 = vst.msk [vmem:[#allocation2 + $0x8] sm:$0xff] %vm869, %v911
          %v916 = vld [vmem:[%s5] sm:$0xf]
          %v917 = vld [vmem:[%s5 + $0x4] sm:$0xf]
          %v918 = vld [vmem:[%s5 + $0x8] sm:$0xf]
          %v919 = vld [vmem:[%s5 + $0xc] sm:$0xf]
          %v924 = vunpack.c.l.b16 %v916
          %v925 = vunpack.c.l.b16 %v917
          %v926 = vunpack.c.l.b16 %v918
          %v927 = vunpack.c.l.b16 %v919
          %v928 = vpack.c.b16 %v925, %v924
          %v929 = vpack.c.b16 %v927, %v926
          %932 = vmatprep.subr.bf16.mxu0 0
          %933 = vmatpush1.bf16.msra.mxu0 %v928
          %934 = vmatprep.subr.bf16.mxu0 0
          %935 = vmatpush1.bf16.msra.mxu0 %v929
          %936 = vmatprep.subr.bf16.mxu0 0
          %937 = vmatpush1.bf16.msra.mxu0 0
          %938 = vmatprep.subr.bf16.mxu0 0
          %939 = vmatpush1.bf16.msra.mxu0 0
          %940 = vmatprep.subr.bf16.mxu0 0
          %941 = vmatpush1.bf16.msra.mxu0 0
          %942 = vmatprep.subr.bf16.mxu0 0
          %943 = vmatpush1.bf16.msra.mxu0 0
          %944 = vmatprep.subr.bf16.mxu0 0
          %945 = vmatpush1.bf16.msra.mxu0 0
          %946 = vmatprep.subr.bf16.mxu0 0
          %947 = vmatpush1.bf16.msra.mxu0 0
          %948 = vmatprep.subr.bf16.mxu0 0
          %949 = vmatpush1.bf16.msra.mxu0 0
          %950 = vmatprep.subr.bf16.mxu0 0
          %951 = vmatpush1.bf16.msra.mxu0 0
          %952 = vmatprep.subr.bf16.mxu0 0
          %953 = vmatpush1.bf16.msra.mxu0 0
          %954 = vmatprep.subr.bf16.mxu0 0
          %955 = vmatpush1.bf16.msra.mxu0 0
          %956 = vmatprep.subr.bf16.mxu0 0
          %957 = vmatpush1.bf16.msra.mxu0 0
          %958 = vmatprep.subr.bf16.mxu0 0
          %959 = vmatpush1.bf16.msra.mxu0 0
          %960 = vmatprep.subr.bf16.mxu0 0
          %961 = vmatpush1.bf16.msra.mxu0 0
          %962 = vmatprep.subr.bf16.mxu0 0
          %963 = vmatpush1.bf16.msra.mxu0 0
          %964 = vmatprep.mubr.bf16.mxu0 0
          %965 = vmatmul.mubr.bf16.gmra.mrb[0].mxu0 %v871
          %v966 = vpop.f32.mrb[0].mxu0
          %v967 = vadd.f32 0.0, %v966
          %v968 = vpop.f32.mrb[0].mxu0
          %v969 = vpop.f32.mrb[0].mxu0
          %v970 = vadd.f32 0.0, %v969
          %v971 = vpop.f32.mrb[0].mxu0
          %972 = vdwg.mxu0
          %973 = vst.msk [vmem:[#allocation3] sm:$0xff] %vm869, 0.0
          %974 = vst.msk [vmem:[#allocation3 + $0x8] sm:$0xff] %vm869, %v967
          %975 = vst.msk [vmem:[#allocation3 + $0x10] sm:$0xff] %vm869, %v970
          %976 = vst.msk [vmem:[#allocation3 + $0x18] sm:$0xff] %vm869, 0.0
          %977 = vst.msk [vmem:[#allocation4] sm:$0xff] %vm869, 0.0
          %978 = vst.msk [vmem:[#allocation4 + $0x8] sm:$0xff] %vm869, 0.0
          %979 = vst.msk [vmem:[#allocation5] sm:$0xff] %vm869, 0.0
          %980 = vst.msk [vmem:[#allocation5 + $0x8] sm:$0xff] %vm869, 0.0
        $region120: #{tpu_custom_call.1} parent=115 // pred_fallthru
          _
        %s981 = sadd.s32 %s43, 9
        %s982 = scalar_lea.vmem [#allocation3], %s981
        %v983 = vld [vmem:[%s982] sm:$0xff]
        %v984 = vld [vmem:[%s982 + $0x8] sm:$0xff]
        %s985 = sadd.s32 %s43, 1
        %s986 = scalar_lea.vmem [#allocation3], %s985
        %v987 = vld [vmem:[%s986] sm:$0xff]
        %v988 = vld [vmem:[%s986 + $0x8] sm:$0xff]
        %v989 = vlaneseq
        %v990 = vshrl.u32 %v989, 7
        %v991 = vadd.s32 %v990, 8
        %vm992 = vcmp.lt.s32.totalorder %v990, 0
        %v993 = vsub.s32 0, %v990
        %v994 = vsel %vm992, %v993, %v990
        %v995 = vshrl.u32 %v994, 3
        %v996 = vand.u32 %v994, 7
        %v997 = vsub.s32 0, %v996
        %v998 = vsel %vm992, %v997, %v996
        %vm999 = vcmp.lt.s32.totalorder %v991, 0
        %v1000 = vsub.s32 0, %v991
        %v1001 = vsel %vm999, %v1000, %v991
        %v1002 = vshrl.u32 %v1001, 3
        %v1003 = vand.u32 %v1001, 7
        %v1004 = vsub.s32 0, %v1003
        %v1005 = vsel %vm999, %v1004, %v1003
        %vm1006 = vcmp.ne.s32.totalorder %v998, 0
        %vm1007 = vcmp.ne.s32.totalorder %v1005, 0
        %vm1008 = vcmp.lt.s32.totalorder %v998, 0
        %vm1009 = vcmp.lt.s32.totalorder %v1005, 0
        %vm1010 = vmand %vm1008, %vm1006
        %vm1011 = vmand %vm1009, %vm1007
        %v1012 = vadd.s32 %v998, 8
        %v1013 = vadd.s32 %v1005, 8
        %v1014 = vsel %vm1010, %v1012, %v998
        %v1015 = vsel %vm1011, %v1013, %v1005
        %v1016 = vstv %s985
        %v1017 = vadd.s32 %v1014, %v1016
        %v1018 = vadd.s32 %v1015, %v1016
        %vm1019 = vcmp.ge.s32.totalorder %v1017, 8
        %vm1020 = vcmp.ge.s32.totalorder %v1018, 8
        %v1021 = vsel %vm1019, 1, 0
        %v1022 = vsel %vm1020, 1, 0
        %vm1023 = vcmp.eq.s32.totalorder %v1021, 1
        %vm1024 = vcmp.eq.s32.totalorder %v1022, 1
        %v1025 = vsel %vm1023, %v987, %v983
        %v1026 = vsel %vm1024, %v988, %v984
        %v1027 = vld [vmem:[%s832] sm:$0xf]
        %v1028 = vld [vmem:[%s832 + $0x4] sm:$0xf]
        %v1029 = vld [vmem:[%s842] sm:$0xff]
        %v1030 = vld [vmem:[%s842 + $0x8] sm:$0xff]
        %v1031 = vld [vmem:[#allocation2] sm:$0xff]
        %v1032 = vld [vmem:[#allocation2 + $0x8] sm:$0xff]
        %v1033 = vadd.f32 %v1031, %v1025
        %v1034 = vadd.f32 %v1032, %v1026
        %v1035 = vld [vmem:[%s6] sm:$0x1]
        %v1037 = vlaneseq
        %v1038 = vshrl.u32 %v1037, 7
        %v1039 = vsub.s32 0, %v1038
        %v1040 = vrot.slane %v1035, %v1039
        %v1042 = vadd.f32 %v1033, %v1040
        %v1043 = vadd.f32 %v1034, %v1040
        %v1044 = vtanh.pop %v1042
        %v1045 = vtanh.pop %v1043
        %v1046 = vld [vmem:[%s7] sm:$0xf]
        %v1047 = vld [vmem:[%s7 + $0x4] sm:$0xf]
        %v1048 = vld [vmem:[%s7 + $0x8] sm:$0xf]
        %v1049 = vld [vmem:[%s7 + $0xc] sm:$0xf]
        %v1050 = vpack.c.bf16 %v1045, %v1044
        %v1051 = vld [vmem:[%s8] sm:$0x1]
        %v1053 = vlaneseq
        %v1054 = vshrl.u32 %v1053, 7
        %v1055 = vsub.s32 0, %v1054
        %v1056 = vrot.slane %v1051, %v1055
        %v1062 = vunpack.c.l.b16 %v1046
        %v1063 = vunpack.c.l.b16 %v1047
        %v1064 = vunpack.c.l.b16 %v1048
        %v1065 = vunpack.c.l.b16 %v1049
        %v1066 = vpack.c.b16 %v1063, %v1062
        %v1067 = vpack.c.b16 %v1065, %v1064
        %vm1070 = vcmask 261120
        %v1072 = vsel %vm1070, %v1050, 0
        %1074 = vmatprep.subr.bf16.mxu0 0
        %1075 = vmatpush1.bf16.msra.mxu0 %v1066
        %1076 = vmatprep.subr.bf16.mxu0 0
        %1077 = vmatpush1.bf16.msra.mxu0 %v1067
        %1078 = vmatprep.subr.bf16.mxu0 0
        %1079 = vmatpush1.bf16.msra.mxu0 0
        %1080 = vmatprep.subr.bf16.mxu0 0
        %1081 = vmatpush1.bf16.msra.mxu0 0
        %1082 = vmatprep.subr.bf16.mxu0 0
        %1083 = vmatpush1.bf16.msra.mxu0 0
        %1084 = vmatprep.subr.bf16.mxu0 0
        %1085 = vmatpush1.bf16.msra.mxu0 0
        %1086 = vmatprep.subr.bf16.mxu0 0
        %1087 = vmatpush1.bf16.msra.mxu0 0
        %1088 = vmatprep.subr.bf16.mxu0 0
        %1089 = vmatpush1.bf16.msra.mxu0 0
        %1090 = vmatprep.subr.bf16.mxu0 0
        %1091 = vmatpush1.bf16.msra.mxu0 0
        %1092 = vmatprep.subr.bf16.mxu0 0
        %1093 = vmatpush1.bf16.msra.mxu0 0
        %1094 = vmatprep.subr.bf16.mxu0 0
        %1095 = vmatpush1.bf16.msra.mxu0 0
        %1096 = vmatprep.subr.bf16.mxu0 0
        %1097 = vmatpush1.bf16.msra.mxu0 0
        %1098 = vmatprep.subr.bf16.mxu0 0
        %1099 = vmatpush1.bf16.msra.mxu0 0
        %1100 = vmatprep.subr.bf16.mxu0 0
        %1101 = vmatpush1.bf16.msra.mxu0 0
        %1102 = vmatprep.subr.bf16.mxu0 0
        %1103 = vmatpush1.bf16.msra.mxu0 0
        %1104 = vmatprep.subr.bf16.mxu0 0
        %1105 = vmatpush1.bf16.msra.mxu0 0
        %1106 = vmatprep.mubr.bf16.mxu0 0
        %1107 = vmatmul.mubr.bf16.gmra.mrb[0].mxu0 %v1072
        %v1108 = vpop.f32.mrb[0].mxu0
        %v1109 = vadd.f32 %v1056, %v1108
        %v1110 = vpop.f32.mrb[0].mxu0
        %v1111 = vpop.f32.mrb[0].mxu0
        %v1112 = vadd.f32 %v1056, %v1111
        %v1113 = vpop.f32.mrb[0].mxu0
        %1114 = vdwg.mxu0
        %v1115 = vtanh.pop %v1109
        %v1116 = vtanh.pop %v1112
        %v1117 = vld [vmem:[%s9] sm:$0xf]
        %v1118 = vld [vmem:[%s9 + $0x4] sm:$0x3]
        %v1119 = vld [vmem:[%s10] sm:$0x1]
        %v1121 = vlaneseq
        %v1122 = vshrl.u32 %v1121, 7
        %v1123 = vsub.s32 0, %v1122
        %v1124 = vrot.slane %v1119, %v1123
        %v1128 = vunpack.c.l.b16 %v1027
        %v1129 = vunpack.c.l.b16 %v1028
        %v1130 = vpack.c.b16 %v1129, %v1128
        %v1133 = vunpack.c.l.b16 %v1117
        %v1134 = vunpack.c.l.b16 %v1118
        %v1135 = vpack.c.b16 %v1134, %v1133
        %vm1136 = vcmask 89088
        %v1138 = vsel %vm1136, %v1130, 0
        %vm1140 = vcmask 1044480
        %vm1141 = vcmask 1045504
        %v1142 = vsel %vm1140, 4294967295, 65535
        %v1143 = vsel %vm1141, %v1142, 0
        %v1145 = vand.u32 %v1135, %v1143
        %1147 = vmatprep.subr.bf16.mxu0 0
        %1148 = vmatpush1.bf16.msra.mxu0 %v1145
        %1149 = vmatprep.subr.bf16.mxu0 0
        %1150 = vmatpush1.bf16.msra.mxu0 0
        %1151 = vmatprep.subr.bf16.mxu0 0
        %1152 = vmatpush1.bf16.msra.mxu0 0
        %1153 = vmatprep.subr.bf16.mxu0 0
        %1154 = vmatpush1.bf16.msra.mxu0 0
        %1155 = vmatprep.subr.bf16.mxu0 0
        %1156 = vmatpush1.bf16.msra.mxu0 0
        %1157 = vmatprep.subr.bf16.mxu0 0
        %1158 = vmatpush1.bf16.msra.mxu0 0
        %1159 = vmatprep.subr.bf16.mxu0 0
        %1160 = vmatpush1.bf16.msra.mxu0 0
        %1161 = vmatprep.subr.bf16.mxu0 0
        %1162 = vmatpush1.bf16.msra.mxu0 0
        %1163 = vmatprep.subr.bf16.mxu0 0
        %1164 = vmatpush1.bf16.msra.mxu0 0
        %1165 = vmatprep.subr.bf16.mxu0 0
        %1166 = vmatpush1.bf16.msra.mxu0 0
        %1167 = vmatprep.subr.bf16.mxu0 0
        %1168 = vmatpush1.bf16.msra.mxu0 0
        %1169 = vmatprep.subr.bf16.mxu0 0
        %1170 = vmatpush1.bf16.msra.mxu0 0
        %1171 = vmatprep.subr.bf16.mxu0 0
        %1172 = vmatpush1.bf16.msra.mxu0 0
        %1173 = vmatprep.subr.bf16.mxu0 0
        %1174 = vmatpush1.bf16.msra.mxu0 0
        %1175 = vmatprep.subr.bf16.mxu0 0
        %1176 = vmatpush1.bf16.msra.mxu0 0
        %1177 = vmatprep.subr.bf16.mxu0 0
        %1178 = vmatpush1.bf16.msra.mxu0 0
        %1179 = vmatprep.mubr.bf16.mxu0 0
        %1180 = vmatmul.mubr.bf16.gmra.mrb[0].mxu0 %v1138
        %v1181 = vpop.f32.mrb[0].mxu0
        %v1182 = vadd.f32 %v1124, %v1181
        %v1183 = vpop.f32.mrb[0].mxu0
        %v1184 = vpop.f32.mrb[0].mxu0
        %v1185 = vadd.f32 %v1124, %v1184
        %v1186 = vpop.f32.mrb[0].mxu0
        %1187 = vdwg.mxu0
        %v1188 = vmax.f32 %v1182, 0.0
        %v1189 = vmax.f32 %v1185, 0.0
        %v1190 = vld [vmem:[%s11] sm:$0xf]
        %v1191 = vld [vmem:[%s11 + $0x4] sm:$0xf]
        %v1192 = vld [vmem:[%s11 + $0x8] sm:$0xf]
        %v1193 = vld [vmem:[%s11 + $0xc] sm:$0xf]
        %v1194 = vpack.c.bf16 %v1189, %v1188
        %v1195 = vld [vmem:[%s12] sm:$0x1]
        %v1197 = vlaneseq
        %v1198 = vshrl.u32 %v1197, 7
        %v1199 = vsub.s32 0, %v1198
        %v1200 = vrot.slane %v1195, %v1199
        %v1206 = vunpack.c.l.b16 %v1190
        %v1207 = vunpack.c.l.b16 %v1191
        %v1208 = vunpack.c.l.b16 %v1192
        %v1209 = vunpack.c.l.b16 %v1193
        %v1210 = vpack.c.b16 %v1207, %v1206
        %v1211 = vpack.c.b16 %v1209, %v1208
        %v1215 = vsel %vm1070, %v1194, 0
        %1217 = vmatprep.subr.bf16.mxu0 0
        %1218 = vmatpush1.bf16.msra.mxu0 %v1210
        %1219 = vmatprep.subr.bf16.mxu0 0
        %1220 = vmatpush1.bf16.msra.mxu0 %v1211
        %1221 = vmatprep.subr.bf16.mxu0 0
        %1222 = vmatpush1.bf16.msra.mxu0 0
        %1223 = vmatprep.subr.bf16.mxu0 0
        %1224 = vmatpush1.bf16.msra.mxu0 0
        %1225 = vmatprep.subr.bf16.mxu0 0
        %1226 = vmatpush1.bf16.msra.mxu0 0
        %1227 = vmatprep.subr.bf16.mxu0 0
        %1228 = vmatpush1.bf16.msra.mxu0 0
        %1229 = vmatprep.subr.bf16.mxu0 0
        %1230 = vmatpush1.bf16.msra.mxu0 0
        %1231 = vmatprep.subr.bf16.mxu0 0
        %1232 = vmatpush1.bf16.msra.mxu0 0
        %1233 = vmatprep.subr.bf16.mxu0 0
        %1234 = vmatpush1.bf16.msra.mxu0 0
        %1235 = vmatprep.subr.bf16.mxu0 0
        %1236 = vmatpush1.bf16.msra.mxu0 0
        %1237 = vmatprep.subr.bf16.mxu0 0
        %1238 = vmatpush1.bf16.msra.mxu0 0
        %1239 = vmatprep.subr.bf16.mxu0 0
        %1240 = vmatpush1.bf16.msra.mxu0 0
        %1241 = vmatprep.subr.bf16.mxu0 0
        %1242 = vmatpush1.bf16.msra.mxu0 0
        %1243 = vmatprep.subr.bf16.mxu0 0
        %1244 = vmatpush1.bf16.msra.mxu0 0
        %1245 = vmatprep.subr.bf16.mxu0 0
        %1246 = vmatpush1.bf16.msra.mxu0 0
        %1247 = vmatprep.subr.bf16.mxu0 0
        %1248 = vmatpush1.bf16.msra.mxu0 0
        %1249 = vmatprep.mubr.bf16.mxu0 0
        %1250 = vmatmul.mubr.bf16.gmra.mrb[0].mxu0 %v1215
        %v1251 = vpop.f32.mrb[0].mxu0
        %v1252 = vadd.f32 %v1200, %v1251
        %v1253 = vpop.f32.mrb[0].mxu0
        %v1254 = vpop.f32.mrb[0].mxu0
        %v1255 = vadd.f32 %v1200, %v1254
        %v1256 = vpop.f32.mrb[0].mxu0
        %1257 = vdwg.mxu0
        %v1258 = vmax.f32 %v1252, 0.0
        %v1259 = vmax.f32 %v1255, 0.0
        %v1260 = vld [vmem:[#allocation4] sm:$0xff]
        %v1261 = vld [vmem:[#allocation4 + $0x8] sm:$0xff]
        %1263 = vset.pattern.permute.xlu0 0
        %1264 = vperm.xlu0 %1263, %v1029
        %v1265 = vpop.permute.xlu0 %1264
        %1268 = vset.pattern.permute.xlu0 0
        %1269 = vperm.xlu0 %1268, %v1030
        %v1270 = vpop.permute.xlu0 %1269
        %v1272 = vmul.f32 %v1115, %v1265
        %v1273 = vmul.f32 %v1116, %v1270
        %v1274 = vadd.f32 %v1260, %v1272
        %v1275 = vadd.f32 %v1261, %v1273
        %1276 = vst.msk [vmem:[#allocation4] sm:$0xff] %vm1070, %v1274
        %1277 = vst.msk [vmem:[#allocation4 + $0x8] sm:$0xff] %vm1070, %v1275
        %v1278 = vld [vmem:[#allocation5] sm:$0xff]
        %v1279 = vld [vmem:[#allocation5 + $0x8] sm:$0xff]
        %v1280 = vmul.f32 %v1258, %v1265
        %v1281 = vmul.f32 %v1259, %v1270
        %v1282 = vadd.f32 %v1278, %v1280
        %v1283 = vadd.f32 %v1279, %v1281
        %1284 = vst.msk [vmem:[#allocation5] sm:$0xff] %vm1070, %v1282
        %1285 = vst.msk [vmem:[#allocation5 + $0x8] sm:$0xff] %vm1070, %v1283
        %p1286 = scmp.eq.s32.totalorder %s43, 6
        // Predicated region
        $region121: #{tpu_custom_call.1} parent=115 // pred_check
          %p1287 = pneg %p1286
        $region122: #{tpu_custom_call.1} parent=115 // pred_check_branch
          %1289 = sbr.rel (%p1287) target = $region124
        $region123: #{tpu_custom_call.1} parent=115 // pred_region
          %v1290 = vld [vmem:[#allocation4] sm:$0xff]
          %v1291 = vld [vmem:[#allocation4 + $0x8] sm:$0xff]
          %v1292 = vmul.f32 %v1290, 0.14285715
          %v1293 = vmul.f32 %v1291, 0.14285715
          %v1294 = vld [vmem:[#allocation5] sm:$0xff]
          %v1295 = vld [vmem:[#allocation5 + $0x8] sm:$0xff]
          %v1296 = vmul.f32 %v1294, 0.14285715
          %v1297 = vmul.f32 %v1295, 0.14285715
          %v1298 = vld [vmem:[%s816] sm:$0xff]
          %v1299 = vld [vmem:[%s816 + $0x8] sm:$0xff]
          %v1300 = vld [vmem:[%s822] sm:$0xff]
          %v1301 = vld [vmem:[%s822 + $0x8] sm:$0xff]
          %v1302 = vld [vmem:[%s13] sm:$0x3]
          %v1303 = vpack.c.bf16 %v1301, %v1300
          %v1304 = vld [vmem:[%s14] sm:$0x1]
          %v1306 = vlaneseq
          %v1307 = vshrl.u32 %v1306, 7
          %v1308 = vsub.s32 0, %v1307
          %v1309 = vrot.slane %v1304, %v1308
          %vm1311 = vcmask 31744
          %v1313 = vsel %vm1311, %v1303, 0
          %vm1315 = vcmask 1041408
          %v1317 = vsel %vm1315, %v1302, 0
          %1319 = vmatprep.subr.bf16.mxu0 0
          %1320 = vmatpush1.bf16.msra.mxu0 %v1317
          %1321 = vmatprep.subr.bf16.mxu0 0
          %1322 = vmatpush1.bf16.msra.mxu0 0
          %1323 = vmatprep.subr.bf16.mxu0 0
          %1324 = vmatpush1.bf16.msra.mxu0 0
          %1325 = vmatprep.subr.bf16.mxu0 0
          %1326 = vmatpush1.bf16.msra.mxu0 0
          %1327 = vmatprep.subr.bf16.mxu0 0
          %1328 = vmatpush1.bf16.msra.mxu0 0
          %1329 = vmatprep.subr.bf16.mxu0 0
          %1330 = vmatpush1.bf16.msra.mxu0 0
          %1331 = vmatprep.subr.bf16.mxu0 0
          %1332 = vmatpush1.bf16.msra.mxu0 0
          %1333 = vmatprep.subr.bf16.mxu0 0
          %1334 = vmatpush1.bf16.msra.mxu0 0
          %1335 = vmatprep.subr.bf16.mxu0 0
          %1336 = vmatpush1.bf16.msra.mxu0 0
          %1337 = vmatprep.subr.bf16.mxu0 0
          %1338 = vmatpush1.bf16.msra.mxu0 0
          %1339 = vmatprep.subr.bf16.mxu0 0
          %1340 = vmatpush1.bf16.msra.mxu0 0
          %1341 = vmatprep.subr.bf16.mxu0 0
          %1342 = vmatpush1.bf16.msra.mxu0 0
          %1343 = vmatprep.subr.bf16.mxu0 0
          %1344 = vmatpush1.bf16.msra.mxu0 0
          %1345 = vmatprep.subr.bf16.mxu0 0
          %1346 = vmatpush1.bf16.msra.mxu0 0
          %1347 = vmatprep.subr.bf16.mxu0 0
          %1348 = vmatpush1.bf16.msra.mxu0 0
          %1349 = vmatprep.subr.bf16.mxu0 0
          %1350 = vmatpush1.bf16.msra.mxu0 0
          %1351 = vmatprep.mubr.bf16.mxu0 0
          %1352 = vmatmul.mubr.bf16.gmra.mrb[0].mxu0 %v1313
          %v1353 = vpop.f32.mrb[0].mxu0
          %v1354 = vadd.f32 %v1309, %v1353
          %v1355 = vpop.f32.mrb[0].mxu0
          %v1356 = vpop.f32.mrb[0].mxu0
          %v1357 = vadd.f32 %v1309, %v1356
          %v1358 = vpop.f32.mrb[0].mxu0
          %1359 = vdwg.mxu0
          %v1360 = vld [vmem:[%s15] sm:$0xf]
          %v1361 = vld [vmem:[%s15 + $0x4] sm:$0xf]
          %v1362 = vld [vmem:[%s15 + $0x8] sm:$0xf]
          %v1363 = vld [vmem:[%s15 + $0xc] sm:$0xf]
          %v1364 = vpack.c.bf16 %v1297, %v1296
          %v1369 = vunpack.c.l.b16 %v1360
          %v1370 = vunpack.c.l.b16 %v1361
          %v1371 = vunpack.c.l.b16 %v1362
          %v1372 = vunpack.c.l.b16 %v1363
          %v1373 = vpack.c.b16 %v1370, %v1369
          %v1374 = vpack.c.b16 %v1372, %v1371
          %v1378 = vsel %vm1070, %v1364, 0
          %1380 = vmatprep.subr.bf16.mxu0 0
          %1381 = vmatpush1.bf16.msra.mxu0 %v1373
          %1382 = vmatprep.subr.bf16.mxu0 0
          %1383 = vmatpush1.bf16.msra.mxu0 %v1374
          %1384 = vmatprep.subr.bf16.mxu0 0
          %1385 = vmatpush1.bf16.msra.mxu0 0
          %1386 = vmatprep.subr.bf16.mxu0 0
          %1387 = vmatpush1.bf16.msra.mxu0 0
          %1388 = vmatprep.subr.bf16.mxu0 0
          %1389 = vmatpush1.bf16.msra.mxu0 0
          %1390 = vmatprep.subr.bf16.mxu0 0
          %1391 = vmatpush1.bf16.msra.mxu0 0
          %1392 = vmatprep.subr.bf16.mxu0 0
          %1393 = vmatpush1.bf16.msra.mxu0 0
          %1394 = vmatprep.subr.bf16.mxu0 0
          %1395 = vmatpush1.bf16.msra.mxu0 0
          %1396 = vmatprep.subr.bf16.mxu0 0
          %1397 = vmatpush1.bf16.msra.mxu0 0
          %1398 = vmatprep.subr.bf16.mxu0 0
          %1399 = vmatpush1.bf16.msra.mxu0 0
          %1400 = vmatprep.subr.bf16.mxu0 0
          %1401 = vmatpush1.bf16.msra.mxu0 0
          %1402 = vmatprep.subr.bf16.mxu0 0
          %1403 = vmatpush1.bf16.msra.mxu0 0
          %1404 = vmatprep.subr.bf16.mxu0 0
          %1405 = vmatpush1.bf16.msra.mxu0 0
          %1406 = vmatprep.subr.bf16.mxu0 0
          %1407 = vmatpush1.bf16.msra.mxu0 0
          %1408 = vmatprep.subr.bf16.mxu0 0
          %1409 = vmatpush1.bf16.msra.mxu0 0
          %1410 = vmatprep.subr.bf16.mxu0 0
          %1411 = vmatpush1.bf16.msra.mxu0 0
          %1412 = vmatprep.mubr.bf16.mxu0 0
          %1413 = vmatmul.mubr.bf16.gmra.mrb[0].mxu0 %v1378
          %v1414 = vpop.f32.mrb[0].mxu0
          %v1415 = vadd.f32 0.0, %v1414
          %v1416 = vpop.f32.mrb[0].mxu0
          %v1417 = vpop.f32.mrb[0].mxu0
          %v1418 = vadd.f32 0.0, %v1417
          %v1419 = vpop.f32.mrb[0].mxu0
          %1420 = vdwg.mxu0
          %v1421 = vadd.f32 %v1354, %v1415
          %v1422 = vadd.f32 %v1357, %v1418
          %v1423 = vld [vmem:[%s16] sm:$0x1]
          %v1425 = vlaneseq
          %v1426 = vshrl.u32 %v1425, 7
          %v1427 = vsub.s32 0, %v1426
          %v1428 = vrot.slane %v1423, %v1427
          %v1430 = vadd.f32 %v1421, %v1428
          %v1431 = vadd.f32 %v1422, %v1428
          %v1432 = vld [vmem:[%s17] sm:$0xf]
          %v1433 = vld [vmem:[%s17 + $0x4] sm:$0xf]
          %v1434 = vld [vmem:[%s17 + $0x8] sm:$0xf]
          %v1435 = vld [vmem:[%s17 + $0xc] sm:$0xf]
          %v1436 = vpack.c.bf16 %v1293, %v1292
          %v1441 = vunpack.c.l.b16 %v1432
          %v1442 = vunpack.c.l.b16 %v1433
          %v1443 = vunpack.c.l.b16 %v1434
          %v1444 = vunpack.c.l.b16 %v1435
          %v1445 = vpack.c.b16 %v1442, %v1441
          %v1446 = vpack.c.b16 %v1444, %v1443
          %v1450 = vsel %vm1070, %v1436, 0
          %1452 = vmatprep.subr.bf16.mxu0 0
          %1453 = vmatpush1.bf16.msra.mxu0 %v1445
          %1454 = vmatprep.subr.bf16.mxu0 0
          %1455 = vmatpush1.bf16.msra.mxu0 %v1446
          %1456 = vmatprep.subr.bf16.mxu0 0
          %1457 = vmatpush1.bf16.msra.mxu0 0
          %1458 = vmatprep.subr.bf16.mxu0 0
          %1459 = vmatpush1.bf16.msra.mxu0 0
          %1460 = vmatprep.subr.bf16.mxu0 0
          %1461 = vmatpush1.bf16.msra.mxu0 0
          %1462 = vmatprep.subr.bf16.mxu0 0
          %1463 = vmatpush1.bf16.msra.mxu0 0
          %1464 = vmatprep.subr.bf16.mxu0 0
          %1465 = vmatpush1.bf16.msra.mxu0 0
          %1466 = vmatprep.subr.bf16.mxu0 0
          %1467 = vmatpush1.bf16.msra.mxu0 0
          %1468 = vmatprep.subr.bf16.mxu0 0
          %1469 = vmatpush1.bf16.msra.mxu0 0
          %1470 = vmatprep.subr.bf16.mxu0 0
          %1471 = vmatpush1.bf16.msra.mxu0 0
          %1472 = vmatprep.subr.bf16.mxu0 0
          %1473 = vmatpush1.bf16.msra.mxu0 0
          %1474 = vmatprep.subr.bf16.mxu0 0
          %1475 = vmatpush1.bf16.msra.mxu0 0
          %1476 = vmatprep.subr.bf16.mxu0 0
          %1477 = vmatpush1.bf16.msra.mxu0 0
          %1478 = vmatprep.subr.bf16.mxu0 0
          %1479 = vmatpush1.bf16.msra.mxu0 0
          %1480 = vmatprep.subr.bf16.mxu0 0
          %1481 = vmatpush1.bf16.msra.mxu0 0
          %1482 = vmatprep.subr.bf16.mxu0 0
          %1483 = vmatpush1.bf16.msra.mxu0 0
          %1484 = vmatprep.mubr.bf16.mxu0 0
          %1485 = vmatmul.mubr.bf16.gmra.mrb[0].mxu0 %v1450
          %v1486 = vpop.f32.mrb[0].mxu0
          %v1487 = vadd.f32 0.0, %v1486
          %v1488 = vpop.f32.mrb[0].mxu0
          %v1489 = vpop.f32.mrb[0].mxu0
          %v1490 = vadd.f32 0.0, %v1489
          %v1491 = vpop.f32.mrb[0].mxu0
          %1492 = vdwg.mxu0
          %v1493 = vadd.f32 %v1430, %v1487
          %v1494 = vadd.f32 %v1431, %v1490
          %v1495 = vxor.u32 %v1493, 2147483648
          %v1496 = vxor.u32 %v1494, 2147483648
          %v1497 = vmul.f32 %v1495, 1.442695
          %v1498 = vpow.pop %v1497
          %v1499 = vmul.f32 %v1496, 1.442695
          %v1500 = vpow.pop %v1499
          %v1501 = vadd.f32 %v1498, 1.0
          %v1502 = vadd.f32 %v1500, 1.0
          %v1503 = vrcp.pop %v1501
          %v1504 = vmul.f32 1.0, %v1503
          %v1505 = vrcp.pop %v1502
          %v1506 = vmul.f32 1.0, %v1505
          %1509 = vrot.lane.b32.xlu0 %v1487, 64
          %v1510 = vpop.permute.xlu0 %1509
          %1511 = vrot.lane.b32.xlu0 %v1490, 64
          %v1512 = vpop.permute.xlu0 %1511
          %v1515 = vmul.f32 %v1504, %v1510
          %v1516 = vmul.f32 %v1506, %v1512
          %1519 = vrot.lane.b32.xlu0 %v1515, 64
          %v1520 = vpop.permute.xlu0 %1519
          %1521 = vrot.lane.b32.xlu0 %v1516, 64
          %v1522 = vpop.permute.xlu0 %1521
          %v1525 = vadd.f32 %v1430, %v1520
          %v1526 = vadd.f32 %v1431, %v1522
          %v1527 = vtanh.pop %v1525
          %v1528 = vtanh.pop %v1526
          %v1529 = vsub.f32 1.0, %v1504
          %v1530 = vsub.f32 1.0, %v1506
          %1533 = vrot.lane.b32.xlu0 %v1527, 96
          %v1534 = vpop.permute.xlu0 %1533
          %1535 = vrot.lane.b32.xlu0 %v1528, 96
          %v1536 = vpop.permute.xlu0 %1535
          %v1539 = vmul.f32 %v1529, %v1534
          %v1540 = vmul.f32 %v1530, %v1536
          %1543 = vrot.lane.b32.xlu0 %v1298, 32
          %v1544 = vpop.permute.xlu0 %1543
          %1545 = vrot.lane.b32.xlu0 %v1299, 32
          %v1546 = vpop.permute.xlu0 %1545
          %v1549 = vmul.f32 %v1504, %v1544
          %v1550 = vmul.f32 %v1506, %v1546
          %v1551 = vadd.f32 %v1539, %v1549
          %v1552 = vadd.f32 %v1540, %v1550
          %v1553 = vld [vmem:[%s18] sm:$0xf]
          %v1554 = vld [vmem:[%s18 + $0x4] sm:$0xf]
          %v1555 = vld [vmem:[%s18 + $0x8] sm:$0xf]
          %v1556 = vld [vmem:[%s18 + $0xc] sm:$0xf]
          %v1557 = vpack.c.bf16 %v1552, %v1551
          %v1558 = vld [vmem:[%s19] sm:$0x1]
          %v1560 = vlaneseq
          %v1561 = vshrl.u32 %v1560, 7
          %v1562 = vsub.s32 0, %v1561
          %v1563 = vrot.slane %v1558, %v1562
          %1566 = vrot.lane.b32.xlu0 %v1557, 96
          %v1567 = vpop.permute.xlu0 %1566
          %v1572 = vunpack.c.l.b16 %v1553
          %v1573 = vunpack.c.l.b16 %v1554
          %v1574 = vunpack.c.l.b16 %v1555
          %v1575 = vunpack.c.l.b16 %v1556
          %v1576 = vpack.c.b16 %v1573, %v1572
          %v1577 = vpack.c.b16 %v1575, %v1574
          %v1581 = vsel %vm1070, %v1567, 0
          %1583 = vmatprep.subr.bf16.mxu0 0
          %1584 = vmatpush1.bf16.msra.mxu0 %v1576
          %1585 = vmatprep.subr.bf16.mxu0 0
          %1586 = vmatpush1.bf16.msra.mxu0 %v1577
          %1587 = vmatprep.subr.bf16.mxu0 0
          %1588 = vmatpush1.bf16.msra.mxu0 0
          %1589 = vmatprep.subr.bf16.mxu0 0
          %1590 = vmatpush1.bf16.msra.mxu0 0
          %1591 = vmatprep.subr.bf16.mxu0 0
          %1592 = vmatpush1.bf16.msra.mxu0 0
          %1593 = vmatprep.subr.bf16.mxu0 0
          %1594 = vmatpush1.bf16.msra.mxu0 0
          %1595 = vmatprep.subr.bf16.mxu0 0
          %1596 = vmatpush1.bf16.msra.mxu0 0
          %1597 = vmatprep.subr.bf16.mxu0 0
          %1598 = vmatpush1.bf16.msra.mxu0 0
          %1599 = vmatprep.subr.bf16.mxu0 0
          %1600 = vmatpush1.bf16.msra.mxu0 0
          %1601 = vmatprep.subr.bf16.mxu0 0
          %1602 = vmatpush1.bf16.msra.mxu0 0
          %1603 = vmatprep.subr.bf16.mxu0 0
          %1604 = vmatpush1.bf16.msra.mxu0 0
          %1605 = vmatprep.subr.bf16.mxu0 0
          %1606 = vmatpush1.bf16.msra.mxu0 0
          %1607 = vmatprep.subr.bf16.mxu0 0
          %1608 = vmatpush1.bf16.msra.mxu0 0
          %1609 = vmatprep.subr.bf16.mxu0 0
          %1610 = vmatpush1.bf16.msra.mxu0 0
          %1611 = vmatprep.subr.bf16.mxu0 0
          %1612 = vmatpush1.bf16.msra.mxu0 0
          %1613 = vmatprep.subr.bf16.mxu0 0
          %1614 = vmatpush1.bf16.msra.mxu0 0
          %1615 = vmatprep.mubr.bf16.mxu0 0
          %1616 = vmatmul.mubr.bf16.gmra.mrb[0].mxu0 %v1581
          %v1617 = vpop.f32.mrb[0].mxu0
          %v1618 = vadd.f32 %v1563, %v1617
          %v1619 = vpop.f32.mrb[0].mxu0
          %v1620 = vpop.f32.mrb[0].mxu0
          %v1621 = vadd.f32 %v1563, %v1620
          %v1622 = vpop.f32.mrb[0].mxu0
          %1623 = vdwg.mxu0
          %v1624 = vmax.f32 %v1618, 0.0
          %v1625 = vmax.f32 %v1621, 0.0
          %v1626 = vld [vmem:[%s20] sm:$0xf]
          %v1627 = vld [vmem:[%s20 + $0x4] sm:$0xf]
          %v1628 = vld [vmem:[%s20 + $0x8] sm:$0xf]
          %v1629 = vld [vmem:[%s20 + $0xc] sm:$0xf]
          %v1630 = vpack.c.bf16 %v1625, %v1624
          %v1631 = vld [vmem:[%s21] sm:$0x1]
          %v1633 = vlaneseq
          %v1634 = vshrl.u32 %v1633, 7
          %v1635 = vsub.s32 0, %v1634
          %v1636 = vrot.slane %v1631, %v1635
          %v1642 = vunpack.c.l.b16 %v1626
          %v1643 = vunpack.c.l.b16 %v1627
          %v1644 = vunpack.c.l.b16 %v1628
          %v1645 = vunpack.c.l.b16 %v1629
          %v1646 = vpack.c.b16 %v1643, %v1642
          %v1647 = vpack.c.b16 %v1645, %v1644
          %v1651 = vsel %vm1070, %v1630, 0
          %1653 = vmatprep.subr.bf16.mxu0 0
          %1654 = vmatpush1.bf16.msra.mxu0 %v1646
          %1655 = vmatprep.subr.bf16.mxu0 0
          %1656 = vmatpush1.bf16.msra.mxu0 %v1647
          %1657 = vmatprep.subr.bf16.mxu0 0
          %1658 = vmatpush1.bf16.msra.mxu0 0
          %1659 = vmatprep.subr.bf16.mxu0 0
          %1660 = vmatpush1.bf16.msra.mxu0 0
          %1661 = vmatprep.subr.bf16.mxu0 0
          %1662 = vmatpush1.bf16.msra.mxu0 0
          %1663 = vmatprep.subr.bf16.mxu0 0
          %1664 = vmatpush1.bf16.msra.mxu0 0
          %1665 = vmatprep.subr.bf16.mxu0 0
          %1666 = vmatpush1.bf16.msra.mxu0 0
          %1667 = vmatprep.subr.bf16.mxu0 0
          %1668 = vmatpush1.bf16.msra.mxu0 0
          %1669 = vmatprep.subr.bf16.mxu0 0
          %1670 = vmatpush1.bf16.msra.mxu0 0
          %1671 = vmatprep.subr.bf16.mxu0 0
          %1672 = vmatpush1.bf16.msra.mxu0 0
          %1673 = vmatprep.subr.bf16.mxu0 0
          %1674 = vmatpush1.bf16.msra.mxu0 0
          %1675 = vmatprep.subr.bf16.mxu0 0
          %1676 = vmatpush1.bf16.msra.mxu0 0
          %1677 = vmatprep.subr.bf16.mxu0 0
          %1678 = vmatpush1.bf16.msra.mxu0 0
          %1679 = vmatprep.subr.bf16.mxu0 0
          %1680 = vmatpush1.bf16.msra.mxu0 0
          %1681 = vmatprep.subr.bf16.mxu0 0
          %1682 = vmatpush1.bf16.msra.mxu0 0
          %1683 = vmatprep.subr.bf16.mxu0 0
          %1684 = vmatpush1.bf16.msra.mxu0 0
          %1685 = vmatprep.mubr.bf16.mxu0 0
          %1686 = vmatmul.mubr.bf16.gmra.mrb[0].mxu0 %v1651
          %v1687 = vpop.f32.mrb[0].mxu0
          %v1688 = vadd.f32 %v1636, %v1687
          %v1689 = vpop.f32.mrb[0].mxu0
          %v1690 = vpop.f32.mrb[0].mxu0
          %v1691 = vadd.f32 %v1636, %v1690
          %v1692 = vpop.f32.mrb[0].mxu0
          %1693 = vdwg.mxu0
          %v1694 = vmax.f32 %v1688, 0.0
          %v1695 = vmax.f32 %v1691, 0.0
          %v1696 = vld [vmem:[%s22] sm:$0xf]
          %v1697 = vld [vmem:[%s22 + $0x4] sm:$0xf]
          %v1698 = vld [vmem:[%s22 + $0x8] sm:$0xf]
          %v1699 = vld [vmem:[%s22 + $0xc] sm:$0xf]
          %v1700 = vpack.c.bf16 %v1695, %v1694
          %v1701 = vld [vmem:[%s23] sm:$0x1]
          %v1703 = vlaneseq
          %v1704 = vshrl.u32 %v1703, 7
          %v1705 = vsub.s32 0, %v1704
          %v1706 = vrot.slane %v1701, %v1705
          %v1712 = vunpack.c.l.b16 %v1696
          %v1713 = vunpack.c.l.b16 %v1697
          %v1714 = vunpack.c.l.b16 %v1698
          %v1715 = vunpack.c.l.b16 %v1699
          %v1716 = vpack.c.b16 %v1713, %v1712
          %v1717 = vpack.c.b16 %v1715, %v1714
          %v1721 = vsel %vm1070, %v1700, 0
          %1723 = vmatprep.subr.bf16.mxu0 0
          %1724 = vmatpush1.bf16.msra.mxu0 %v1716
          %1725 = vmatprep.subr.bf16.mxu0 0
          %1726 = vmatpush1.bf16.msra.mxu0 %v1717
          %1727 = vmatprep.subr.bf16.mxu0 0
          %1728 = vmatpush1.bf16.msra.mxu0 0
          %1729 = vmatprep.subr.bf16.mxu0 0
          %1730 = vmatpush1.bf16.msra.mxu0 0
          %1731 = vmatprep.subr.bf16.mxu0 0
          %1732 = vmatpush1.bf16.msra.mxu0 0
          %1733 = vmatprep.subr.bf16.mxu0 0
          %1734 = vmatpush1.bf16.msra.mxu0 0
          %1735 = vmatprep.subr.bf16.mxu0 0
          %1736 = vmatpush1.bf16.msra.mxu0 0
          %1737 = vmatprep.subr.bf16.mxu0 0
          %1738 = vmatpush1.bf16.msra.mxu0 0
          %1739 = vmatprep.subr.bf16.mxu0 0
          %1740 = vmatpush1.bf16.msra.mxu0 0
          %1741 = vmatprep.subr.bf16.mxu0 0
          %1742 = vmatpush1.bf16.msra.mxu0 0
          %1743 = vmatprep.subr.bf16.mxu0 0
          %1744 = vmatpush1.bf16.msra.mxu0 0
          %1745 = vmatprep.subr.bf16.mxu0 0
          %1746 = vmatpush1.bf16.msra.mxu0 0
          %1747 = vmatprep.subr.bf16.mxu0 0
          %1748 = vmatpush1.bf16.msra.mxu0 0
          %1749 = vmatprep.subr.bf16.mxu0 0
          %1750 = vmatpush1.bf16.msra.mxu0 0
          %1751 = vmatprep.subr.bf16.mxu0 0
          %1752 = vmatpush1.bf16.msra.mxu0 0
          %1753 = vmatprep.subr.bf16.mxu0 0
          %1754 = vmatpush1.bf16.msra.mxu0 0
          %1755 = vmatprep.mubr.bf16.mxu0 0
          %1756 = vmatmul.mubr.bf16.gmra.mrb[0].mxu0 %v1721
          %v1757 = vpop.f32.mrb[0].mxu0
          %v1758 = vadd.f32 %v1706, %v1757
          %v1759 = vpop.f32.mrb[0].mxu0
          %v1760 = vpop.f32.mrb[0].mxu0
          %v1761 = vadd.f32 %v1706, %v1760
          %v1762 = vpop.f32.mrb[0].mxu0
          %1763 = vdwg.mxu0
          %1766 = vrot.lane.b32.xlu0 %v1551, 96
          %v1767 = vpop.permute.xlu0 %1766
          %1768 = vrot.lane.b32.xlu0 %v1552, 96
          %v1769 = vpop.permute.xlu0 %1768
          %1774 = vrot.lane.b32.xlu0 %v1758, 32
          %v1775 = vpop.permute.xlu0 %1774
          %1776 = vrot.lane.b32.xlu0 %v1761, 32
          %v1777 = vpop.permute.xlu0 %1776
          %v1780 = vsel %vm1070, %v1767, %v1775
          %v1781 = vsel %vm1070, %v1769, %v1777
          %vm1782 = vcmask 293888
          %v1783 = vsel %vm1782, %v1780, 0.0
          %v1784 = vsel %vm1782, %v1781, 0.0
          %1785 = vst [vmem:[%s811] sm:$0xff] %v1783
          %1786 = vst [vmem:[%s811 + $0x8] sm:$0xff] %v1784
        $region124: #{tpu_custom_call.1} parent=115 // pred_fallthru
          _
        %s1787 = sand.u32 %s586, 1
        %s1788 = scalar_lea.sflag [#allocation7], %s1787
        %s1789 = sand.u32 %s586, 1
        %s1790 = smul.addr %s1789, 16
        %s1791 = scalar_lea.vmem [#allocation6], %s1790
        // Predicated region
        $region125: #{tpu_custom_call.1} parent=115 // pred_check
          %p1792 = pneg %p596
        $region126: #{tpu_custom_call.1} parent=115 // pred_check_branch
          %1794 = sbr.rel (%p1792) target = $region128
        $region127: #{tpu_custom_call.1} parent=115 // pred_region
          %s1795 = smul.u32 2, %s42
          %s1797 = ssub.s32 256, 256
          %1798 = vsyncadd %s1788, %s1797
          %s1799 = smul.addr %s1795, 128
          %s1800 = scalar_lea.hbm %s24, %s1799
          %s1801 = sshll.u32 %s1791, 4
          %s1802 = int_to_ptr.vmem [resolvable:$true] %s1801
          %1807 = dma.vmem_to_hbm [thread:$0]  %s1802, 256, %s1800, %s1788, 128, 128, 8
        $region128: #{tpu_custom_call.1} parent=115 // pred_fallthru
          _
      $region116: #{tpu_custom_call.1} parent=5 // pred_fallthru
        _
      %p1808 = scmp.le.s32.totalorder 2, %s33
      // Predicated region
      $region129: #{tpu_custom_call.1} parent=5 // pred_check
        %p1809 = pneg %p1808
      $region130: #{tpu_custom_call.1} parent=5 // pred_check_branch
        %1811 = sbr.rel (%p1809) target = $region132
      $region131: #{tpu_custom_call.1} parent=5 // pred_region
        %s1812 = ssub.s32 %s33, 2
        // Predicated region
        $region133: #{tpu_custom_call.1} parent=131 // pred_check
          %p1813 = pneg %p602
        $region134: #{tpu_custom_call.1} parent=131 // pred_check_branch
          %1815 = sbr.rel (%p1813) target = $region136
        $region135: #{tpu_custom_call.1} parent=131 // pred_region
          %s1816 = sand.u32 %s587, 1
          %s1817 = scalar_lea.sflag [#allocation7], %s1816
          %s1818 = sand.u32 %s587, 1
          %s1819 = smul.addr %s1818, 16
          %s1820 = scalar_lea.vmem [#allocation6], %s1819
          %1821 = dma.done %s1817, 256
        $region136: #{tpu_custom_call.1} parent=131 // pred_fallthru
          _
      $region132: #{tpu_custom_call.1} parent=5 // pred_fallthru
        _
    $region6: #{tpu_custom_call.1} parent=1 // loop_footer
      %s37 = sadd.s32 1, %s33
    $region7: #{tpu_custom_call.1} parent=1 // loop_footer_branch
      %32 = sbr.rel target = $region3
    $region8: #{tpu_custom_call.1} parent=1 // loop_exit
      _
    %1822 = vsyncpa [#allocation7], 1
    %s1823 = scalar_lea.sflag [#allocation7], 1
    %1824 = vsyncpa %s1823, 1

</llo_original>
